<compile_context>
chip_gen: v7x
topology: tpu7x:2x2x1
jax: 0.10.0
libtpu: 0.0.40
codegen_flags: <defaults>
</compile_context>

<pallas_src>
import functools

import jax
import jax.numpy as jnp
from jax.experimental import pallas as pl
from jax.experimental.pallas import tpu as pltpu

PADDING = 8  # Branch.padding


# --------------------------------------------------------------------------
# Kernels
# --------------------------------------------------------------------------
def _branch_trunk_kernel_dense(rho_ref, rw_ref, bias_ref, x2_ref, out_ref):
    """bt batch elements per grid step; C folded into the block.

    rho_ref : (bt, n1, n2)  zero-padded branch input (dense lanes, channel squeezed)
    rw_ref  : (n2, L)       rw[y, y*W + w] = branch_weight[w]  (block diagonal)
    bias_ref: (n1, L)       branch_bias inside the original X*Y region, 0 in the pad
    x2_ref  : (C, 1, L)     x2[c, 0, y*W + w] = freq[c]*trunk_w[w] + trunk_b[w]
    out_ref : (bt, C, n1, L)  lane-dense output slab, L = n2 * W
    """
    bt = out_ref.shape[0]
    for b in range(bt):                      # static unroll; bt kept small by wrapper
        # Branch fc0 + pad, directly in the lane-flattened (y, w) layout.  The
        # tiny constant matmul runs on the otherwise-idle MXU and performs the
        # "repeat rho[x,y] W times along lanes" data movement for free.
        x1 = jnp.dot(rho_ref[b], rw_ref[...],
                     preferred_element_type=jnp.float32,
                     precision=jax.lax.Precision.HIGHEST) + bias_ref[...]   # (n1, L)
        # einsum 'bxyz,cz->bcxyz' for this b, all C at once (pure VPU broadcast).
        out_ref[b] = (x1[None, :, :] * x2_ref[...]).astype(out_ref.dtype)   # (C, n1, L)


def _branch_trunk_kernel_chunked(rho_ref, rep_ref, wb128_ref, bias_ref, x2_ref,
                                 out_ref, x1_scr):
    """Large-n2 variant: the lane repeat uses a tiny (g, 128) 0/1 matrix per
    128-lane chunk instead of the O(n2*L) dense block-diagonal matrix, so the
    weight VMEM and MXU FLOPs stay O(n1*L) per batch element.

    rho_ref  : (bt, n1, n2)
    rep_ref  : (g, 128)   rep[t, t*W + w] = 1,  g = 128 // W
    wb128_ref: (1, 128)   branch weight tiled g times along lanes
    bias_ref : (n1, L)
    x2_ref   : (C, 1, L)
    out_ref  : (bt, C, n1, L)
    x1_scr   : (n1, L) f32 VMEM scratch
    """
    bt, _, n1, L = out_ref.shape
    g = rep_ref.shape[0]
    for b in range(bt):
        for j in range(L // 128):            # static unroll over 128-lane chunks
            lanes = pl.ds(j * 128, 128)
            rep = jnp.dot(rho_ref[b, :, pl.ds(j * g, g)], rep_ref[...],
                          preferred_element_type=jnp.float32,
                          precision=jax.lax.Precision.HIGHEST)      # (n1, 128)
            x1_scr[:, lanes] = rep * wb128_ref[...] + bias_ref[:, lanes]
        out_ref[b] = (x1_scr[...][None, :, :] * x2_ref[...]).astype(out_ref.dtype)


# --------------------------------------------------------------------------
# Wrapper-side prep (parameter-only; hoist out of the per-call path)
# --------------------------------------------------------------------------
def _use_chunked(n2, W):
    """Switch to the chunked branch linear once the dense (n2, L) repeat matrix
    would be too large for VMEM / waste too many MXU FLOPs (static decision)."""
    if W > 128 or 128 % W != 0:
        return False
    g = 128 // W
    L = n2 * W
    return (n2 % g == 0) and (n2 * L * 4 > (2 << 20))


def precompute_constants(params, X, Y):
    """B-independent, parameter-only constants.  Compute ONCE per parameter
    set / shape and reuse across forward calls (perf-review hoist)."""
    wb, bb, _, _ = params
    W = wb.shape[-1]
    n1, n2 = X + PADDING, Y + PADDING
    L = n2 * W
    # bias_plane[x, y*W + w] = bb[w] inside the original X x Y region, else 0
    # (the spatial pad is applied AFTER the linear, so the pad stays exactly 0).
    mask = ((jnp.arange(n1) < X)[:, None] &
            (jnp.arange(n2) < Y)[None, :]).astype(jnp.float32)          # (n1, n2)
    bias_plane = (mask[:, :, None] * bb[0][None, None, :]).reshape(n1, L)
    if _use_chunked(n2, W):
        g = 128 // W
        # rep[t, t*W + w] = 1 : 0/1 repeat matrix for one 128-lane chunk.
        rep = (jnp.eye(g, dtype=jnp.float32)[:, :, None]
               * jnp.ones((W,), jnp.float32)).reshape(g, 128)
        wb128 = jnp.tile(wb, (1, g))                                    # (1, 128)
        return (rep, wb128, bias_plane)
    # rw[y, y*W + w] = wb[w] : dense block-diagonal repeat+scale matrix.
    rw = (jnp.eye(n2, dtype=jnp.float32)[:, :, None]
          * wb[0][None, None, :]).reshape(n2, L)
    return (rw, bias_plane)


def _pick_batch_group(B, bytes_per_batch, target_bytes=4 << 20):
    """Largest divisor of B whose per-step output block stays under
    target_bytes.  At demo scale this collapses the grid to one step (kills
    per-step overhead); at scale it reverts to many "parallel" steps so both
    v7x TensorCores stay fed and blocks stay within v7x's 64 MiB VMEM."""
    bt = 1
    for cand in range(1, B + 1):
        if B % cand == 0 and cand * bytes_per_batch <= target_bytes:
            bt = cand
    return bt


# --------------------------------------------------------------------------
# Forward
# --------------------------------------------------------------------------
def branch_trunk_forward(branch_rho, trunk_freq, params, constants=None):
    """branch_rho: (B, X, Y, 1) f32; trunk_freq: (C, 1) f32 -> (B*C, X+8, Y+8, W)."""
    wb, bb, wt, btr = params                     # each (1, W) f32
    B, X, Y, _ = branch_rho.shape
    C = trunk_freq.shape[0]
    W = wb.shape[-1]
    n1, n2 = X + PADDING, Y + PADDING
    L = n2 * W        # flattened (y, w) lane axis; keep it a multiple of 128
                      # for full-width stores (demo L = 512).

    if constants is None:
        constants = precompute_constants(params, X, Y)

    # ---- tiny per-call prep: O(B*n1*n2) + O(C*L), not the hot loop ----
    rho_pad = jnp.pad(branch_rho[..., 0],
                      ((0, 0), (0, PADDING), (0, PADDING)))             # (B, n1, n2)
    x2 = trunk_freq * wt + btr                                          # (C, W) trunk fc0
    x2_tile = jnp.tile(x2, (1, n2))[:, None, :]                         # (C, 1, L)

    bt = _pick_batch_group(B, C * n1 * L * 4)
    grid = (B // bt,)                            # (1,) at demo scale

    if _use_chunked(n2, W):
        rep, wb128, bias_plane = constants
        kernel = _branch_trunk_kernel_chunked
        const_inputs = (rep, wb128, bias_plane)
        const_specs = [
            pl.BlockSpec(rep.shape, lambda i: (0, 0)),
            pl.BlockSpec(wb128.shape, lambda i: (0, 0)),
            pl.BlockSpec((n1, L), lambda i: (0, 0)),
        ]
        scratch_shapes = [pltpu.VMEM((n1, L), jnp.float32)]
    else:
        rw, bias_plane = constants
        kernel = _branch_trunk_kernel_dense
        const_inputs = (rw, bias_plane)
        const_specs = [
            pl.BlockSpec((n2, L), lambda i: (0, 0)),
            pl.BlockSpec((n1, L), lambda i: (0, 0)),
        ]
        scratch_shapes = []

    out = pl.pallas_call(
        kernel,
        out_shape=jax.ShapeDtypeStruct((B, C, n1, L), jnp.float32),
        grid_spec=pltpu.PrefetchScalarGridSpec(
            num_scalar_prefetch=0,
            grid=grid,
            in_specs=[pl.BlockSpec((bt, n1, n2), lambda i: (i, 0, 0))]   # rho_pad
                     + const_specs
                     + [pl.BlockSpec((C, 1, L), lambda i: (0, 0, 0))],   # x2_tile
            out_specs=pl.BlockSpec((bt, C, n1, L), lambda i: (i, 0, 0, 0)),
            scratch_shapes=scratch_shapes,
        ),
        compiler_params=pltpu.CompilerParams(
            dimension_semantics=("parallel",)),
    )(rho_pad, *const_inputs, x2_tile)

    # (B, C, n1, n2*W) -> (B*C, n1, n2, W): contiguous, free metadata reshape;
    # element order matches torch's einsum(...).view(-1, n1, n2, n3).
    return out.reshape(B * C, n1, n2, W)


# --------------------------------------------------------------------------
# Pure-JAX reference + init
# --------------------------------------------------------------------------
def reference_forward(branch_rho, trunk_freq, params):
    """Pure-JAX replica of the PyTorch forward, for verification."""
    wb, bb, wt, btr = params
    W = wb.shape[-1]
    x1 = branch_rho * wb.reshape(1, 1, 1, W) + bb.reshape(1, 1, 1, W)
    x1 = jnp.pad(x1, ((0, 0), (0, PADDING), (0, PADDING), (0, 0)))
    x2 = trunk_freq * wt + btr                   # (C, W)
    x = jnp.einsum('bxyz,cz->bcxyz', x1, x2)
    return x.reshape(-1, x1.shape[1], x1.shape[2], x1.shape[3])


def init_params(key, width):
    """Deterministic init matching nn.Linear(1, width): U(-1, 1) (fan_in=1)."""
    k1, k2, k3, k4 = jax.random.split(key, 4)
    wb = jax.random.uniform(k1, (1, width), jnp.float32, -1.0, 1.0)  # branch weight[:,0]
    bb = jax.random.uniform(k2, (1, width), jnp.float32, -1.0, 1.0)  # branch bias
    wt = jax.random.uniform(k3, (1, width), jnp.float32, -1.0, 1.0)  # trunk weight[:,0]
    bt = jax.random.uniform(k4, (1, width), jnp.float32, -1.0, 1.0)  # trunk bias
    return wb, bb, wt, bt


if __name__ == "__main__":
    key = jax.random.PRNGKey(0)
    k_p, k_rho, k_freq = jax.random.split(key, 3)

    B, X, Y, width, C = 2, 8, 8, 32, 4
    params = init_params(k_p, width)
    branch_rho = jax.random.normal(k_rho, (B, X, Y, 1), jnp.float32)
    trunk_freq = jax.random.normal(k_freq, (C, 1), jnp.float32)

    # Hoist the parameter-only constants out of the per-call path (one-time prep).
    constants = precompute_constants(params, X, Y)

    fwd = jax.jit(functools.partial(branch_trunk_forward,
                                    params=params, constants=constants))
    out = jax.block_until_ready(fwd(branch_rho, trunk_freq))

    ref = jax.block_until_ready(reference_forward(branch_rho, trunk_freq, params))
    assert out.shape == (B * C, X + PADDING, Y + PADDING, width), out.shape
    assert jnp.allclose(out, ref, atol=1e-5, rtol=1e-5), \
        float(jnp.max(jnp.abs(out - ref)))
    print("KERNEL_OK")
</pallas_src>

<mosaic_0001>
module attributes {stable_mosaic.version = 11 : i64} {
  func.func @_branch_trunk_kernel_dense(%arg0: i32, %arg1: memref<2x16x16xf32, #tpu.memory_space<vmem>>, %arg2: memref<16x512xf32, #tpu.memory_space<vmem>>, %arg3: memref<16x512xf32, #tpu.memory_space<vmem>>, %arg4: memref<4x1x512xf32, #tpu.memory_space<vmem>>, %arg5: memref<2x4x16x512xf32, #tpu.memory_space<vmem>>) attributes {dimension_semantics = [#tpu.dimension_semantics<parallel>], iteration_bounds = array<i64: 1>, scalar_prefetch = 0 : i64, scratch_operands = 0 : i64, tpu.core_type = #tpu.core_type<tc>, window_params = [{transform_indices = @transform_0, window_bounds = array<i64: 2, 16, 16>}, {pipeline_mode = #tpu.pipeline_mode<synchronous>, transform_indices = @transform_1, window_bounds = array<i64: 16, 512>}, {pipeline_mode = #tpu.pipeline_mode<synchronous>, transform_indices = @transform_2, window_bounds = array<i64: 16, 512>}, {pipeline_mode = #tpu.pipeline_mode<synchronous>, transform_indices = @transform_3, window_bounds = array<i64: 4, 1, 512>}, {transform_indices = @transform_4, window_bounds = array<i64: 2, 4, 16, 512>}]} {
    %c0 = arith.constant 0 : index
    %c0_0 = arith.constant 0 : index
    %c0_1 = arith.constant 0 : index
    %0 = vector.load %arg1[%c0, %c0_0, %c0_1] : memref<2x16x16xf32, #tpu.memory_space<vmem>>, vector<1x16x16xf32>
    %1 = vector.shape_cast %0 : vector<1x16x16xf32> to vector<16x16xf32>
    %c0_2 = arith.constant 0 : index
    %c0_3 = arith.constant 0 : index
    %2 = vector.load %arg2[%c0_2, %c0_3] : memref<16x512xf32, #tpu.memory_space<vmem>>, vector<16x512xf32>
    %cst = arith.constant dense<0.000000e+00> : vector<16x512xf32>
    %3 = tpu.matmul %1, %2, %cst {dimension_numbers = #tpu.dot_dimension_numbers<[1], [0], [0], [1], [0, 0, 1, 1], [], []>, precision = #tpu.contract_precision<fp32>} : vector<16x16xf32>, vector<16x512xf32>, vector<16x512xf32> -> vector<16x512xf32>
    %c0_4 = arith.constant 0 : index
    %c0_5 = arith.constant 0 : index
    %4 = vector.load %arg3[%c0_4, %c0_5] : memref<16x512xf32, #tpu.memory_space<vmem>>, vector<16x512xf32>
    %5 = arith.addf %3, %4 : vector<16x512xf32>
    %6 = vector.shape_cast %5 : vector<16x512xf32> to vector<1x16x512xf32>
    %c0_6 = arith.constant 0 : index
    %c0_7 = arith.constant 0 : index
    %c0_8 = arith.constant 0 : index
    %7 = vector.load %arg4[%c0_6, %c0_7, %c0_8] : memref<4x1x512xf32, #tpu.memory_space<vmem>>, vector<4x1x512xf32>
    %8 = vector.broadcast %6 : vector<1x16x512xf32> to vector<4x16x512xf32>
    %9 = vector.broadcast %7 : vector<4x1x512xf32> to vector<4x16x512xf32>
    %10 = arith.mulf %8, %9 : vector<4x16x512xf32>
    %c0_9 = arith.constant 0 : index
    %c0_10 = arith.constant 0 : index
    %c0_11 = arith.constant 0 : index
    %c0_12 = arith.constant 0 : index
    %11 = vector.load %arg5[%c0_9, %c0_10, %c0_11, %c0_12] : memref<2x4x16x512xf32, #tpu.memory_space<vmem>>, vector<1x4x16x512xf32>
    %12 = vector.shape_cast %11 : vector<1x4x16x512xf32> to vector<4x16x512xf32>
    %13 = vector.shape_cast %10 : vector<4x16x512xf32> to vector<1x4x16x512xf32>
    tpu.vector_store %arg5[%c0_9, %c0_10, %c0_11, %c0_12], %13 {strides = array<i32>} : memref<2x4x16x512xf32, #tpu.memory_space<vmem>>, vector<1x4x16x512xf32>,
    %c1 = arith.constant 1 : index
    %c0_13 = arith.constant 0 : index
    %c0_14 = arith.constant 0 : index
    %14 = vector.load %arg1[%c1, %c0_13, %c0_14] : memref<2x16x16xf32, #tpu.memory_space<vmem>>, vector<1x16x16xf32>
    %15 = vector.shape_cast %14 : vector<1x16x16xf32> to vector<16x16xf32>
    %c0_15 = arith.constant 0 : index
    %c0_16 = arith.constant 0 : index
    %16 = vector.load %arg2[%c0_15, %c0_16] : memref<16x512xf32, #tpu.memory_space<vmem>>, vector<16x512xf32>
    %cst_17 = arith.constant dense<0.000000e+00> : vector<16x512xf32>
    %17 = tpu.matmul %15, %16, %cst_17 {dimension_numbers = #tpu.dot_dimension_numbers<[1], [0], [0], [1], [0, 0, 1, 1], [], []>, precision = #tpu.contract_precision<fp32>} : vector<16x16xf32>, vector<16x512xf32>, vector<16x512xf32> -> vector<16x512xf32>
    %c0_18 = arith.constant 0 : index
    %c0_19 = arith.constant 0 : index
    %18 = vector.load %arg3[%c0_18, %c0_19] : memref<16x512xf32, #tpu.memory_space<vmem>>, vector<16x512xf32>
    %19 = arith.addf %17, %18 : vector<16x512xf32>
    %20 = vector.shape_cast %19 : vector<16x512xf32> to vector<1x16x512xf32>
    %c0_20 = arith.constant 0 : index
    %c0_21 = arith.constant 0 : index
    %c0_22 = arith.constant 0 : index
    %21 = vector.load %arg4[%c0_20, %c0_21, %c0_22] : memref<4x1x512xf32, #tpu.memory_space<vmem>>, vector<4x1x512xf32>
    %22 = vector.broadcast %20 : vector<1x16x512xf32> to vector<4x16x512xf32>
    %23 = vector.broadcast %21 : vector<4x1x512xf32> to vector<4x16x512xf32>
    %24 = arith.mulf %22, %23 : vector<4x16x512xf32>
    %c1_23 = arith.constant 1 : index
    %c0_24 = arith.constant 0 : index
    %c0_25 = arith.constant 0 : index
    %c0_26 = arith.constant 0 : index
    %25 = vector.load %arg5[%c1_23, %c0_24, %c0_25, %c0_26] : memref<2x4x16x512xf32, #tpu.memory_space<vmem>>, vector<1x4x16x512xf32>
    %26 = vector.shape_cast %25 : vector<1x4x16x512xf32> to vector<4x16x512xf32>
    %27 = vector.shape_cast %24 : vector<4x16x512xf32> to vector<1x4x16x512xf32>
    tpu.vector_store %arg5[%c1_23, %c0_24, %c0_25, %c0_26], %27 {strides = array<i32>} : memref<2x4x16x512xf32, #tpu.memory_space<vmem>>, vector<1x4x16x512xf32>,
    return
  }
  func.func @transform_0(%arg0: i32) -> (i32, i32, i32) {
    %c0_i32 = arith.constant 0 : i32
    %c0_i32_0 = arith.constant 0 : i32
    %c0_i32_1 = arith.constant 0 : i32
    return %arg0, %c0_i32, %c0_i32_0 : i32, i32, i32
  }
  func.func @transform_1(%arg0: i32) -> (i32, i32) {
    %c0_i32 = arith.constant 0 : i32
    %c0_i32_0 = arith.constant 0 : i32
    %c0_i32_1 = arith.constant 0 : i32
    return %c0_i32, %c0_i32_0 : i32, i32
  }
  func.func @transform_2(%arg0: i32) -> (i32, i32) {
    %c0_i32 = arith.constant 0 : i32
    %c0_i32_0 = arith.constant 0 : i32
    %c0_i32_1 = arith.constant 0 : i32
    return %c0_i32, %c0_i32_0 : i32, i32
  }
  func.func @transform_3(%arg0: i32) -> (i32, i32, i32) {
    %c0_i32 = arith.constant 0 : i32
    %c0_i32_0 = arith.constant 0 : i32
    %c0_i32_1 = arith.constant 0 : i32
    %c0_i32_2 = arith.constant 0 : i32
    return %c0_i32, %c0_i32_0, %c0_i32_1 : i32, i32, i32
  }
  func.func @transform_4(%arg0: i32) -> (i32, i32, i32, i32) {
    %c0_i32 = arith.constant 0 : i32
    %c0_i32_0 = arith.constant 0 : i32
    %c0_i32_1 = arith.constant 0 : i32
    %c0_i32_2 = arith.constant 0 : i32
    return %arg0, %c0_i32, %c0_i32_0, %c0_i32_1 : i32, i32, i32, i32
  }
}

</mosaic_0001>

<llo_original>
// kernel: branch_trunk_forward.1
$region0: #{branch_trunk_forward.1}
  #allocation0 [shape = 'u32[]', space=smem, size = 0x4, offset = 0x4, fixed_abs, tag = 'smem constant byte address 0x4 - core index']
  #allocation1 [shape = 'u32[144,128]{1,0:T(1,128)}', space=vmem, size = 0x12000, scoped, tag = 'internal scratch']
  %s0 = inlined_call_operand.vmem [shape: f32[2,16,16], index: 0, kind: input, shape index: {}]
  %s1 = inlined_call_operand.vmem [shape: f32[16,512], index: 1, kind: input, shape index: {}]
  %s2 = inlined_call_operand.vmem [shape: f32[16,512], index: 2, kind: input, shape index: {}]
  %s3 = inlined_call_operand.vmem [shape: f32[4,1,512], index: 3, kind: input, shape index: {}]
  %s4 = inlined_call_operand.vmem [shape: f32[2,4,16,512], index: 4, kind: output, shape index: {}]
  %s5 = sld [smem:[#allocation0]]
  $region26: #{branch_trunk_forward.1} parent=0
    _
  %s7 = ssub.s32 1, %s5
  %s8 = scalar_select 0, %s7, %s5
  // Predicated region
  $region2: #{branch_trunk_forward.1} parent=0 // pred_check
    _
  $region3: #{branch_trunk_forward.1} parent=0 // pred_check_branch
    %10 = sbr.rel (0) target = $region5
  $region4: #{branch_trunk_forward.1} parent=0 // pred_region
    _
  $region5: #{branch_trunk_forward.1} parent=0 // pred_fallthru
    _
  // Predicated region
  $region6: #{branch_trunk_forward.1} parent=0 // pred_check
    _
  $region7: #{branch_trunk_forward.1} parent=0 // pred_check_branch
    %12 = sbr.rel (0) target = $region9
  $region8: #{branch_trunk_forward.1} parent=0 // pred_region
    _
  $region9: #{branch_trunk_forward.1} parent=0 // pred_fallthru
    _
  // Predicated region
  $region10: #{branch_trunk_forward.1} parent=0 // pred_check
    _
  $region11: #{branch_trunk_forward.1} parent=0 // pred_check_branch
    %14 = sbr.rel (0) target = $region13
  $region12: #{branch_trunk_forward.1} parent=0 // pred_region
    _
  $region13: #{branch_trunk_forward.1} parent=0 // pred_fallthru
    _
  // Predicated region
  $region14: #{branch_trunk_forward.1} parent=0 // pred_check
    _
  $region15: #{branch_trunk_forward.1} parent=0 // pred_check_branch
    %16 = sbr.rel (0) target = $region17
  $region16: #{branch_trunk_forward.1} parent=0 // pred_region
    _
  $region17: #{branch_trunk_forward.1} parent=0 // pred_fallthru
    _
  %v17 = vld [vmem:[%s0] sm:$0xff]
  %v18 = vld [vmem:[%s0 + $0x8] sm:$0xff]
  %v19 = vld [vmem:[%s1] sm:$0xff]
  %v20 = vld [vmem:[%s1 + $0x8] sm:$0xff]
  %v21 = vld [vmem:[%s1 + $0x10] sm:$0xff]
  %v22 = vld [vmem:[%s1 + $0x18] sm:$0xff]
  %v23 = vld [vmem:[%s1 + $0x20] sm:$0xff]
  %v24 = vld [vmem:[%s1 + $0x28] sm:$0xff]
  %v25 = vld [vmem:[%s1 + $0x30] sm:$0xff]
  %v26 = vld [vmem:[%s1 + $0x38] sm:$0xff]
  %v27 = vld [vmem:[%s2] sm:$0xff]
  %v28 = vld [vmem:[%s2 + $0x8] sm:$0xff]
  %v29 = vld [vmem:[%s2 + $0x10] sm:$0xff]
  %v30 = vld [vmem:[%s2 + $0x18] sm:$0xff]
  %v31 = vld [vmem:[%s2 + $0x20] sm:$0xff]
  %v32 = vld [vmem:[%s2 + $0x28] sm:$0xff]
  %v33 = vld [vmem:[%s2 + $0x30] sm:$0xff]
  %v34 = vld [vmem:[%s2 + $0x38] sm:$0xff]
  %vm35 = vcmask 130048
  %v37 = vsel %vm35, %v17, 0
  %v40 = vsel %vm35, %v18, 0
  %v42 = vand.u32 %v20, 4294901760
  %43 = vmatprep.subr.mxu0 %v42
  %v44 = vand.u32 %v19, 4294901760
  %45 = vmatpush1.msra.mxu0 %v44
  %v46 = vand.u32 %v24, 4294901760
  %47 = vmatprep.subr.mxu0 %v46
  %v48 = vand.u32 %v23, 4294901760
  %49 = vmatpush1.msra.mxu0 %v48
  %50 = vmatprep.subr.mxu0 0.0
  %51 = vmatpush1.msra.mxu0 0.0
  %52 = vmatprep.subr.mxu0 0.0
  %53 = vmatpush1.msra.mxu0 0.0
  %54 = vmatprep.subr.mxu0 0.0
  %55 = vmatpush1.msra.mxu0 0.0
  %56 = vmatprep.subr.mxu0 0.0
  %57 = vmatpush1.msra.mxu0 0.0
  %58 = vmatprep.subr.mxu0 0.0
  %59 = vmatpush1.msra.mxu0 0.0
  %60 = vmatprep.subr.mxu0 0.0
  %61 = vmatpush1.msra.mxu0 0.0
  %62 = vmatprep.subr.mxu0 0.0
  %63 = vmatpush1.msra.mxu0 0.0
  %64 = vmatprep.subr.mxu0 0.0
  %65 = vmatpush1.msra.mxu0 0.0
  %66 = vmatprep.subr.mxu0 0.0
  %67 = vmatpush1.msra.mxu0 0.0
  %68 = vmatprep.subr.mxu0 0.0
  %69 = vmatpush1.msra.mxu0 0.0
  %70 = vmatprep.subr.mxu0 0.0
  %71 = vmatpush1.msra.mxu0 0.0
  %72 = vmatprep.subr.mxu0 0.0
  %73 = vmatpush1.msra.mxu0 0.0
  %74 = vmatprep.subr.mxu0 0.0
  %75 = vmatpush1.msra.mxu0 0.0
  %76 = vmatprep.subr.mxu0 0.0
  %77 = vmatpush1.msra.mxu0 0.0
  %78 = vmatprep.subr.mxu0 0.0
  %79 = vmatpush1.msra.mxu0 0.0
  %80 = vmatprep.subr.mxu0 0.0
  %81 = vmatpush1.msra.mxu0 0.0
  %82 = vmatprep.subr.mxu0 0.0
  %83 = vmatpush1.msra.mxu0 0.0
  %84 = vmatprep.subr.mxu0 0.0
  %85 = vmatpush1.msra.mxu0 0.0
  %86 = vmatprep.subr.mxu0 0.0
  %87 = vmatpush1.msra.mxu0 0.0
  %88 = vmatprep.subr.mxu0 0.0
  %89 = vmatpush1.msra.mxu0 0.0
  %90 = vmatprep.subr.mxu0 0.0
  %91 = vmatpush1.msra.mxu0 0.0
  %92 = vmatprep.subr.mxu0 0.0
  %93 = vmatpush1.msra.mxu0 0.0
  %94 = vmatprep.subr.mxu0 0.0
  %95 = vmatpush1.msra.mxu0 0.0
  %96 = vmatprep.subr.mxu0 0.0
  %97 = vmatpush1.msra.mxu0 0.0
  %98 = vmatprep.subr.mxu0 0.0
  %99 = vmatpush1.msra.mxu0 0.0
  %100 = vmatprep.subr.mxu0 0.0
  %101 = vmatpush1.msra.mxu0 0.0
  %102 = vmatprep.subr.mxu0 0.0
  %103 = vmatpush1.msra.mxu0 0.0
  %104 = vmatprep.subr.mxu0 0.0
  %105 = vmatpush1.msra.mxu0 0.0
  %106 = vmatprep.subr.mxu0 0.0
  %107 = vmatpush1.msra.mxu0 0.0
  %108 = vmatprep.subr.mxu0 0.0
  %109 = vmatpush1.msra.mxu0 0.0
  %110 = vmatprep.mubr.f32.mxu0 0.0
  %v111 = vand.u32 %v37, 4294901760
  %v112 = vsub.f32 %v37, %v111
  %v113 = vand.u32 %v112, 4294901760
  %v114 = vsub.f32 %v112, %v113
  %v115 = vand.u32 %v114, 4294901760
  %116 = vmatmul.mubr.f32.gmra.mrb[0].mxu0 %v115
  %v117 = vpop.f32.mrb[0].mxu0
  %v118 = vadd.f32 %v27, %v117
  %v119 = vpop.f32.mrb[0].mxu0
  %v120 = vadd.f32 %v28, %v119
  %121 = vmatprep.mubr.f32.mxu0 0.0
  %v122 = vand.u32 %v40, 4294901760
  %v123 = vsub.f32 %v40, %v122
  %v124 = vand.u32 %v123, 4294901760
  %v125 = vsub.f32 %v123, %v124
  %v126 = vand.u32 %v125, 4294901760
  %127 = vmatmul.mubr.f32.gmra.mrb[0].mxu0 %v126
  %v128 = vpop.f32.mrb[0].mxu0
  %v129 = vadd.f32 %v31, %v128
  %v130 = vpop.f32.mrb[0].mxu0
  %v131 = vadd.f32 %v32, %v130
  %132 = vdwg.mxu0
  %v133 = vand.u32 %v20, 4294901760
  %v134 = vsub.f32 %v20, %v133
  %v135 = vand.u32 %v134, 4294901760
  %v136 = vsub.f32 %v134, %v135
  %v137 = vand.u32 %v136, 4294901760
  %138 = vmatprep.subr.mxu0 %v137
  %v139 = vand.u32 %v19, 4294901760
  %v140 = vsub.f32 %v19, %v139
  %v141 = vand.u32 %v140, 4294901760
  %v142 = vsub.f32 %v140, %v141
  %v143 = vand.u32 %v142, 4294901760
  %144 = vmatpush1.msra.mxu0 %v143
  %v145 = vand.u32 %v24, 4294901760
  %v146 = vsub.f32 %v24, %v145
  %v147 = vand.u32 %v146, 4294901760
  %v148 = vsub.f32 %v146, %v147
  %v149 = vand.u32 %v148, 4294901760
  %150 = vmatprep.subr.mxu0 %v149
  %v151 = vand.u32 %v23, 4294901760
  %v152 = vsub.f32 %v23, %v151
  %v153 = vand.u32 %v152, 4294901760
  %v154 = vsub.f32 %v152, %v153
  %v155 = vand.u32 %v154, 4294901760
  %156 = vmatpush1.msra.mxu0 %v155
  %157 = vmatprep.subr.mxu0 0.0
  %158 = vmatpush1.msra.mxu0 0.0
  %159 = vmatprep.subr.mxu0 0.0
  %160 = vmatpush1.msra.mxu0 0.0
  %161 = vmatprep.subr.mxu0 0.0
  %162 = vmatpush1.msra.mxu0 0.0
  %163 = vmatprep.subr.mxu0 0.0
  %164 = vmatpush1.msra.mxu0 0.0
  %165 = vmatprep.subr.mxu0 0.0
  %166 = vmatpush1.msra.mxu0 0.0
  %167 = vmatprep.subr.mxu0 0.0
  %168 = vmatpush1.msra.mxu0 0.0
  %169 = vmatprep.subr.mxu0 0.0
  %170 = vmatpush1.msra.mxu0 0.0
  %171 = vmatprep.subr.mxu0 0.0
  %172 = vmatpush1.msra.mxu0 0.0
  %173 = vmatprep.subr.mxu0 0.0
  %174 = vmatpush1.msra.mxu0 0.0
  %175 = vmatprep.subr.mxu0 0.0
  %176 = vmatpush1.msra.mxu0 0.0
  %177 = vmatprep.subr.mxu0 0.0
  %178 = vmatpush1.msra.mxu0 0.0
  %179 = vmatprep.subr.mxu0 0.0
  %180 = vmatpush1.msra.mxu0 0.0
  %181 = vmatprep.subr.mxu0 0.0
  %182 = vmatpush1.msra.mxu0 0.0
  %183 = vmatprep.subr.mxu0 0.0
  %184 = vmatpush1.msra.mxu0 0.0
  %185 = vmatprep.subr.mxu0 0.0
  %186 = vmatpush1.msra.mxu0 0.0
  %187 = vmatprep.subr.mxu0 0.0
  %188 = vmatpush1.msra.mxu0 0.0
  %189 = vmatprep.subr.mxu0 0.0
  %190 = vmatpush1.msra.mxu0 0.0
  %191 = vmatprep.subr.mxu0 0.0
  %192 = vmatpush1.msra.mxu0 0.0
  %193 = vmatprep.subr.mxu0 0.0
  %194 = vmatpush1.msra.mxu0 0.0
  %195 = vmatprep.subr.mxu0 0.0
  %196 = vmatpush1.msra.mxu0 0.0
  %197 = vmatprep.subr.mxu0 0.0
  %198 = vmatpush1.msra.mxu0 0.0
  %199 = vmatprep.subr.mxu0 0.0
  %200 = vmatpush1.msra.mxu0 0.0
  %201 = vmatprep.subr.mxu0 0.0
  %202 = vmatpush1.msra.mxu0 0.0
  %203 = vmatprep.subr.mxu0 0.0
  %204 = vmatpush1.msra.mxu0 0.0
  %205 = vmatprep.subr.mxu0 0.0
  %206 = vmatpush1.msra.mxu0 0.0
  %207 = vmatprep.subr.mxu0 0.0
  %208 = vmatpush1.msra.mxu0 0.0
  %209 = vmatprep.subr.mxu0 0.0
  %210 = vmatpush1.msra.mxu0 0.0
  %211 = vmatprep.subr.mxu0 0.0
  %212 = vmatpush1.msra.mxu0 0.0
  %213 = vmatprep.subr.mxu0 0.0
  %214 = vmatpush1.msra.mxu0 0.0
  %215 = vmatprep.subr.mxu0 0.0
  %216 = vmatpush1.msra.mxu0 0.0
  %217 = vmatprep.mubr.f32.mxu0 0.0
  %v218 = vand.u32 %v37, 4294901760
  %219 = vmatmul.mubr.f32.gmra.mrb[0].mxu0 %v218
  %v220 = vpop.f32.mrb[0].mxu0
  %v221 = vadd.f32 %v118, %v220
  %v222 = vpop.f32.mrb[0].mxu0
  %v223 = vadd.f32 %v120, %v222
  %224 = vmatprep.mubr.f32.mxu0 0.0
  %v225 = vand.u32 %v40, 4294901760
  %226 = vmatmul.mubr.f32.gmra.mrb[0].mxu0 %v225
  %v227 = vpop.f32.mrb[0].mxu0
  %v228 = vadd.f32 %v129, %v227
  %v229 = vpop.f32.mrb[0].mxu0
  %v230 = vadd.f32 %v131, %v229
  %231 = vdwg.mxu0
  %v232 = vand.u32 %v20, 4294901760
  %v233 = vsub.f32 %v20, %v232
  %234 = vmatprep.subr.mxu0 %v233
  %v235 = vand.u32 %v19, 4294901760
  %v236 = vsub.f32 %v19, %v235
  %237 = vmatpush1.msra.mxu0 %v236
  %v238 = vand.u32 %v24, 4294901760
  %v239 = vsub.f32 %v24, %v238
  %240 = vmatprep.subr.mxu0 %v239
  %v241 = vand.u32 %v23, 4294901760
  %v242 = vsub.f32 %v23, %v241
  %243 = vmatpush1.msra.mxu0 %v242
  %244 = vmatprep.subr.mxu0 0.0
  %245 = vmatpush1.msra.mxu0 0.0
  %246 = vmatprep.subr.mxu0 0.0
  %247 = vmatpush1.msra.mxu0 0.0
  %248 = vmatprep.subr.mxu0 0.0
  %249 = vmatpush1.msra.mxu0 0.0
  %250 = vmatprep.subr.mxu0 0.0
  %251 = vmatpush1.msra.mxu0 0.0
  %252 = vmatprep.subr.mxu0 0.0
  %253 = vmatpush1.msra.mxu0 0.0
  %254 = vmatprep.subr.mxu0 0.0
  %255 = vmatpush1.msra.mxu0 0.0
  %256 = vmatprep.subr.mxu0 0.0
  %257 = vmatpush1.msra.mxu0 0.0
  %258 = vmatprep.subr.mxu0 0.0
  %259 = vmatpush1.msra.mxu0 0.0
  %260 = vmatprep.subr.mxu0 0.0
  %261 = vmatpush1.msra.mxu0 0.0
  %262 = vmatprep.subr.mxu0 0.0
  %263 = vmatpush1.msra.mxu0 0.0
  %264 = vmatprep.subr.mxu0 0.0
  %265 = vmatpush1.msra.mxu0 0.0
  %266 = vmatprep.subr.mxu0 0.0
  %267 = vmatpush1.msra.mxu0 0.0
  %268 = vmatprep.subr.mxu0 0.0
  %269 = vmatpush1.msra.mxu0 0.0
  %270 = vmatprep.subr.mxu0 0.0
  %271 = vmatpush1.msra.mxu0 0.0
  %272 = vmatprep.subr.mxu0 0.0
  %273 = vmatpush1.msra.mxu0 0.0
  %274 = vmatprep.subr.mxu0 0.0
  %275 = vmatpush1.msra.mxu0 0.0
  %276 = vmatprep.subr.mxu0 0.0
  %277 = vmatpush1.msra.mxu0 0.0
  %278 = vmatprep.subr.mxu0 0.0
  %279 = vmatpush1.msra.mxu0 0.0
  %280 = vmatprep.subr.mxu0 0.0
  %281 = vmatpush1.msra.mxu0 0.0
  %282 = vmatprep.subr.mxu0 0.0
  %283 = vmatpush1.msra.mxu0 0.0
  %284 = vmatprep.subr.mxu0 0.0
  %285 = vmatpush1.msra.mxu0 0.0
  %286 = vmatprep.subr.mxu0 0.0
  %287 = vmatpush1.msra.mxu0 0.0
  %288 = vmatprep.subr.mxu0 0.0
  %289 = vmatpush1.msra.mxu0 0.0
  %290 = vmatprep.subr.mxu0 0.0
  %291 = vmatpush1.msra.mxu0 0.0
  %292 = vmatprep.subr.mxu0 0.0
  %293 = vmatpush1.msra.mxu0 0.0
  %294 = vmatprep.subr.mxu0 0.0
  %295 = vmatpush1.msra.mxu0 0.0
  %296 = vmatprep.subr.mxu0 0.0
  %297 = vmatpush1.msra.mxu0 0.0
  %298 = vmatprep.subr.mxu0 0.0
  %299 = vmatpush1.msra.mxu0 0.0
  %300 = vmatprep.subr.mxu0 0.0
  %301 = vmatpush1.msra.mxu0 0.0
  %302 = vmatprep.subr.mxu0 0.0
  %303 = vmatpush1.msra.mxu0 0.0
  %304 = vmatprep.mubr.f32.mxu0 0.0
  %v305 = vand.u32 %v37, 4294901760
  %v306 = vsub.f32 %v37, %v305
  %307 = vmatmul.mubr.f32.gmra.mrb[0].mxu0 %v306
  %v308 = vpop.f32.mrb[0].mxu0
  %v309 = vadd.f32 %v221, %v308
  %v310 = vpop.f32.mrb[0].mxu0
  %v311 = vadd.f32 %v223, %v310
  %312 = vmatprep.mubr.f32.mxu0 0.0
  %v313 = vand.u32 %v40, 4294901760
  %v314 = vsub.f32 %v40, %v313
  %315 = vmatmul.mubr.f32.gmra.mrb[0].mxu0 %v314
  %v316 = vpop.f32.mrb[0].mxu0
  %v317 = vadd.f32 %v228, %v316
  %v318 = vpop.f32.mrb[0].mxu0
  %v319 = vadd.f32 %v230, %v318
  %320 = vdwg.mxu0
  %v321 = vand.u32 %v20, 4294901760
  %322 = vmatprep.subr.mxu0 %v321
  %v323 = vand.u32 %v19, 4294901760
  %324 = vmatpush1.msra.mxu0 %v323
  %v325 = vand.u32 %v24, 4294901760
  %326 = vmatprep.subr.mxu0 %v325
  %v327 = vand.u32 %v23, 4294901760
  %328 = vmatpush1.msra.mxu0 %v327
  %329 = vmatprep.subr.mxu0 0.0
  %330 = vmatpush1.msra.mxu0 0.0
  %331 = vmatprep.subr.mxu0 0.0
  %332 = vmatpush1.msra.mxu0 0.0
  %333 = vmatprep.subr.mxu0 0.0
  %334 = vmatpush1.msra.mxu0 0.0
  %335 = vmatprep.subr.mxu0 0.0
  %336 = vmatpush1.msra.mxu0 0.0
  %337 = vmatprep.subr.mxu0 0.0
  %338 = vmatpush1.msra.mxu0 0.0
  %339 = vmatprep.subr.mxu0 0.0
  %340 = vmatpush1.msra.mxu0 0.0
  %341 = vmatprep.subr.mxu0 0.0
  %342 = vmatpush1.msra.mxu0 0.0
  %343 = vmatprep.subr.mxu0 0.0
  %344 = vmatpush1.msra.mxu0 0.0
  %345 = vmatprep.subr.mxu0 0.0
  %346 = vmatpush1.msra.mxu0 0.0
  %347 = vmatprep.subr.mxu0 0.0
  %348 = vmatpush1.msra.mxu0 0.0
  %349 = vmatprep.subr.mxu0 0.0
  %350 = vmatpush1.msra.mxu0 0.0
  %351 = vmatprep.subr.mxu0 0.0
  %352 = vmatpush1.msra.mxu0 0.0
  %353 = vmatprep.subr.mxu0 0.0
  %354 = vmatpush1.msra.mxu0 0.0
  %355 = vmatprep.subr.mxu0 0.0
  %356 = vmatpush1.msra.mxu0 0.0
  %357 = vmatprep.subr.mxu0 0.0
  %358 = vmatpush1.msra.mxu0 0.0
  %359 = vmatprep.subr.mxu0 0.0
  %360 = vmatpush1.msra.mxu0 0.0
  %361 = vmatprep.subr.mxu0 0.0
  %362 = vmatpush1.msra.mxu0 0.0
  %363 = vmatprep.subr.mxu0 0.0
  %364 = vmatpush1.msra.mxu0 0.0
  %365 = vmatprep.subr.mxu0 0.0
  %366 = vmatpush1.msra.mxu0 0.0
  %367 = vmatprep.subr.mxu0 0.0
  %368 = vmatpush1.msra.mxu0 0.0
  %369 = vmatprep.subr.mxu0 0.0
  %370 = vmatpush1.msra.mxu0 0.0
  %371 = vmatprep.subr.mxu0 0.0
  %372 = vmatpush1.msra.mxu0 0.0
  %373 = vmatprep.subr.mxu0 0.0
  %374 = vmatpush1.msra.mxu0 0.0
  %375 = vmatprep.subr.mxu0 0.0
  %376 = vmatpush1.msra.mxu0 0.0
  %377 = vmatprep.subr.mxu0 0.0
  %378 = vmatpush1.msra.mxu0 0.0
  %379 = vmatprep.subr.mxu0 0.0
  %380 = vmatpush1.msra.mxu0 0.0
  %381 = vmatprep.subr.mxu0 0.0
  %382 = vmatpush1.msra.mxu0 0.0
  %383 = vmatprep.subr.mxu0 0.0
  %384 = vmatpush1.msra.mxu0 0.0
  %385 = vmatprep.subr.mxu0 0.0
  %386 = vmatpush1.msra.mxu0 0.0
  %387 = vmatprep.subr.mxu0 0.0
  %388 = vmatpush1.msra.mxu0 0.0
  %389 = vmatprep.mubr.f32.mxu0 0.0
  %v390 = vand.u32 %v37, 4294901760
  %v391 = vsub.f32 %v37, %v390
  %v392 = vand.u32 %v391, 4294901760
  %393 = vmatmul.mubr.f32.gmra.mrb[0].mxu0 %v392
  %v394 = vpop.f32.mrb[0].mxu0
  %v395 = vadd.f32 %v309, %v394
  %v396 = vpop.f32.mrb[0].mxu0
  %v397 = vadd.f32 %v311, %v396
  %398 = vmatprep.mubr.f32.mxu0 0.0
  %v399 = vand.u32 %v40, 4294901760
  %v400 = vsub.f32 %v40, %v399
  %v401 = vand.u32 %v400, 4294901760
  %402 = vmatmul.mubr.f32.gmra.mrb[0].mxu0 %v401
  %v403 = vpop.f32.mrb[0].mxu0
  %v404 = vadd.f32 %v317, %v403
  %v405 = vpop.f32.mrb[0].mxu0
  %v406 = vadd.f32 %v319, %v405
  %407 = vdwg.mxu0
  %v408 = vand.u32 %v20, 4294901760
  %v409 = vsub.f32 %v20, %v408
  %v410 = vand.u32 %v409, 4294901760
  %411 = vmatprep.subr.mxu0 %v410
  %v412 = vand.u32 %v19, 4294901760
  %v413 = vsub.f32 %v19, %v412
  %v414 = vand.u32 %v413, 4294901760
  %415 = vmatpush1.msra.mxu0 %v414
  %v416 = vand.u32 %v24, 4294901760
  %v417 = vsub.f32 %v24, %v416
  %v418 = vand.u32 %v417, 4294901760
  %419 = vmatprep.subr.mxu0 %v418
  %v420 = vand.u32 %v23, 4294901760
  %v421 = vsub.f32 %v23, %v420
  %v422 = vand.u32 %v421, 4294901760
  %423 = vmatpush1.msra.mxu0 %v422
  %424 = vmatprep.subr.mxu0 0.0
  %425 = vmatpush1.msra.mxu0 0.0
  %426 = vmatprep.subr.mxu0 0.0
  %427 = vmatpush1.msra.mxu0 0.0
  %428 = vmatprep.subr.mxu0 0.0
  %429 = vmatpush1.msra.mxu0 0.0
  %430 = vmatprep.subr.mxu0 0.0
  %431 = vmatpush1.msra.mxu0 0.0
  %432 = vmatprep.subr.mxu0 0.0
  %433 = vmatpush1.msra.mxu0 0.0
  %434 = vmatprep.subr.mxu0 0.0
  %435 = vmatpush1.msra.mxu0 0.0
  %436 = vmatprep.subr.mxu0 0.0
  %437 = vmatpush1.msra.mxu0 0.0
  %438 = vmatprep.subr.mxu0 0.0
  %439 = vmatpush1.msra.mxu0 0.0
  %440 = vmatprep.subr.mxu0 0.0
  %441 = vmatpush1.msra.mxu0 0.0
  %442 = vmatprep.subr.mxu0 0.0
  %443 = vmatpush1.msra.mxu0 0.0
  %444 = vmatprep.subr.mxu0 0.0
  %445 = vmatpush1.msra.mxu0 0.0
  %446 = vmatprep.subr.mxu0 0.0
  %447 = vmatpush1.msra.mxu0 0.0
  %448 = vmatprep.subr.mxu0 0.0
  %449 = vmatpush1.msra.mxu0 0.0
  %450 = vmatprep.subr.mxu0 0.0
  %451 = vmatpush1.msra.mxu0 0.0
  %452 = vmatprep.subr.mxu0 0.0
  %453 = vmatpush1.msra.mxu0 0.0
  %454 = vmatprep.subr.mxu0 0.0
  %455 = vmatpush1.msra.mxu0 0.0
  %456 = vmatprep.subr.mxu0 0.0
  %457 = vmatpush1.msra.mxu0 0.0
  %458 = vmatprep.subr.mxu0 0.0
  %459 = vmatpush1.msra.mxu0 0.0
  %460 = vmatprep.subr.mxu0 0.0
  %461 = vmatpush1.msra.mxu0 0.0
  %462 = vmatprep.subr.mxu0 0.0
  %463 = vmatpush1.msra.mxu0 0.0
  %464 = vmatprep.subr.mxu0 0.0
  %465 = vmatpush1.msra.mxu0 0.0
  %466 = vmatprep.subr.mxu0 0.0
  %467 = vmatpush1.msra.mxu0 0.0
  %468 = vmatprep.subr.mxu0 0.0
  %469 = vmatpush1.msra.mxu0 0.0
  %470 = vmatprep.subr.mxu0 0.0
  %471 = vmatpush1.msra.mxu0 0.0
  %472 = vmatprep.subr.mxu0 0.0
  %473 = vmatpush1.msra.mxu0 0.0
  %474 = vmatprep.subr.mxu0 0.0
  %475 = vmatpush1.msra.mxu0 0.0
  %476 = vmatprep.subr.mxu0 0.0
  %477 = vmatpush1.msra.mxu0 0.0
  %478 = vmatprep.subr.mxu0 0.0
  %479 = vmatpush1.msra.mxu0 0.0
  %480 = vmatprep.subr.mxu0 0.0
  %481 = vmatpush1.msra.mxu0 0.0
  %482 = vmatprep.subr.mxu0 0.0
  %483 = vmatpush1.msra.mxu0 0.0
  %484 = vmatprep.mubr.f32.mxu0 0.0
  %v485 = vand.u32 %v37, 4294901760
  %486 = vmatmul.mubr.f32.gmra.mrb[0].mxu0 %v485
  %v487 = vpop.f32.mrb[0].mxu0
  %v488 = vadd.f32 %v395, %v487
  %v489 = vpop.f32.mrb[0].mxu0
  %v490 = vadd.f32 %v397, %v489
  %491 = vmatprep.mubr.f32.mxu0 0.0
  %v492 = vand.u32 %v40, 4294901760
  %493 = vmatmul.mubr.f32.gmra.mrb[0].mxu0 %v492
  %v494 = vpop.f32.mrb[0].mxu0
  %v495 = vadd.f32 %v404, %v494
  %v496 = vpop.f32.mrb[0].mxu0
  %v497 = vadd.f32 %v406, %v496
  %498 = vdwg.mxu0
  %v499 = vand.u32 %v20, 4294901760
  %500 = vmatprep.subr.mxu0 %v499
  %v501 = vand.u32 %v19, 4294901760
  %502 = vmatpush1.msra.mxu0 %v501
  %v503 = vand.u32 %v24, 4294901760
  %504 = vmatprep.subr.mxu0 %v503
  %v505 = vand.u32 %v23, 4294901760
  %506 = vmatpush1.msra.mxu0 %v505
  %507 = vmatprep.subr.mxu0 0.0
  %508 = vmatpush1.msra.mxu0 0.0
  %509 = vmatprep.subr.mxu0 0.0
  %510 = vmatpush1.msra.mxu0 0.0
  %511 = vmatprep.subr.mxu0 0.0
  %512 = vmatpush1.msra.mxu0 0.0
  %513 = vmatprep.subr.mxu0 0.0
  %514 = vmatpush1.msra.mxu0 0.0
  %515 = vmatprep.subr.mxu0 0.0
  %516 = vmatpush1.msra.mxu0 0.0
  %517 = vmatprep.subr.mxu0 0.0
  %518 = vmatpush1.msra.mxu0 0.0
  %519 = vmatprep.subr.mxu0 0.0
  %520 = vmatpush1.msra.mxu0 0.0
  %521 = vmatprep.subr.mxu0 0.0
  %522 = vmatpush1.msra.mxu0 0.0
  %523 = vmatprep.subr.mxu0 0.0
  %524 = vmatpush1.msra.mxu0 0.0
  %525 = vmatprep.subr.mxu0 0.0
  %526 = vmatpush1.msra.mxu0 0.0
  %527 = vmatprep.subr.mxu0 0.0
  %528 = vmatpush1.msra.mxu0 0.0
  %529 = vmatprep.subr.mxu0 0.0
  %530 = vmatpush1.msra.mxu0 0.0
  %531 = vmatprep.subr.mxu0 0.0
  %532 = vmatpush1.msra.mxu0 0.0
  %533 = vmatprep.subr.mxu0 0.0
  %534 = vmatpush1.msra.mxu0 0.0
  %535 = vmatprep.subr.mxu0 0.0
  %536 = vmatpush1.msra.mxu0 0.0
  %537 = vmatprep.subr.mxu0 0.0
  %538 = vmatpush1.msra.mxu0 0.0
  %539 = vmatprep.subr.mxu0 0.0
  %540 = vmatpush1.msra.mxu0 0.0
  %541 = vmatprep.subr.mxu0 0.0
  %542 = vmatpush1.msra.mxu0 0.0
  %543 = vmatprep.subr.mxu0 0.0
  %544 = vmatpush1.msra.mxu0 0.0
  %545 = vmatprep.subr.mxu0 0.0
  %546 = vmatpush1.msra.mxu0 0.0
  %547 = vmatprep.subr.mxu0 0.0
  %548 = vmatpush1.msra.mxu0 0.0
  %549 = vmatprep.subr.mxu0 0.0
  %550 = vmatpush1.msra.mxu0 0.0
  %551 = vmatprep.subr.mxu0 0.0
  %552 = vmatpush1.msra.mxu0 0.0
  %553 = vmatprep.subr.mxu0 0.0
  %554 = vmatpush1.msra.mxu0 0.0
  %555 = vmatprep.subr.mxu0 0.0
  %556 = vmatpush1.msra.mxu0 0.0
  %557 = vmatprep.subr.mxu0 0.0
  %558 = vmatpush1.msra.mxu0 0.0
  %559 = vmatprep.subr.mxu0 0.0
  %560 = vmatpush1.msra.mxu0 0.0
  %561 = vmatprep.subr.mxu0 0.0
  %562 = vmatpush1.msra.mxu0 0.0
  %563 = vmatprep.subr.mxu0 0.0
  %564 = vmatpush1.msra.mxu0 0.0
  %565 = vmatprep.subr.mxu0 0.0
  %566 = vmatpush1.msra.mxu0 0.0
  %567 = vmatprep.mubr.f32.mxu0 0.0
  %v568 = vand.u32 %v37, 4294901760
  %569 = vmatmul.mubr.f32.gmra.mrb[0].mxu0 %v568
  %v570 = vpop.f32.mrb[0].mxu0
  %v571 = vadd.f32 %v488, %v570
  %v572 = vpop.f32.mrb[0].mxu0
  %v573 = vadd.f32 %v490, %v572
  %574 = vmatprep.mubr.f32.mxu0 0.0
  %v575 = vand.u32 %v40, 4294901760
  %576 = vmatmul.mubr.f32.gmra.mrb[0].mxu0 %v575
  %v577 = vpop.f32.mrb[0].mxu0
  %v578 = vadd.f32 %v495, %v577
  %v579 = vpop.f32.mrb[0].mxu0
  %v580 = vadd.f32 %v497, %v579
  %581 = vdwg.mxu0
  %v582 = vand.u32 %v22, 4294901760
  %583 = vmatprep.subr.mxu0 %v582
  %v584 = vand.u32 %v21, 4294901760
  %585 = vmatpush1.msra.mxu0 %v584
  %v586 = vand.u32 %v26, 4294901760
  %587 = vmatprep.subr.mxu0 %v586
  %v588 = vand.u32 %v25, 4294901760
  %589 = vmatpush1.msra.mxu0 %v588
  %590 = vmatprep.subr.mxu0 0.0
  %591 = vmatpush1.msra.mxu0 0.0
  %592 = vmatprep.subr.mxu0 0.0
  %593 = vmatpush1.msra.mxu0 0.0
  %594 = vmatprep.subr.mxu0 0.0
  %595 = vmatpush1.msra.mxu0 0.0
  %596 = vmatprep.subr.mxu0 0.0
  %597 = vmatpush1.msra.mxu0 0.0
  %598 = vmatprep.subr.mxu0 0.0
  %599 = vmatpush1.msra.mxu0 0.0
  %600 = vmatprep.subr.mxu0 0.0
  %601 = vmatpush1.msra.mxu0 0.0
  %602 = vmatprep.subr.mxu0 0.0
  %603 = vmatpush1.msra.mxu0 0.0
  %604 = vmatprep.subr.mxu0 0.0
  %605 = vmatpush1.msra.mxu0 0.0
  %606 = vmatprep.subr.mxu0 0.0
  %607 = vmatpush1.msra.mxu0 0.0
  %608 = vmatprep.subr.mxu0 0.0
  %609 = vmatpush1.msra.mxu0 0.0
  %610 = vmatprep.subr.mxu0 0.0
  %611 = vmatpush1.msra.mxu0 0.0
  %612 = vmatprep.subr.mxu0 0.0
  %613 = vmatpush1.msra.mxu0 0.0
  %614 = vmatprep.subr.mxu0 0.0
  %615 = vmatpush1.msra.mxu0 0.0
  %616 = vmatprep.subr.mxu0 0.0
  %617 = vmatpush1.msra.mxu0 0.0
  %618 = vmatprep.subr.mxu0 0.0
  %619 = vmatpush1.msra.mxu0 0.0
  %620 = vmatprep.subr.mxu0 0.0
  %621 = vmatpush1.msra.mxu0 0.0
  %622 = vmatprep.subr.mxu0 0.0
  %623 = vmatpush1.msra.mxu0 0.0
  %624 = vmatprep.subr.mxu0 0.0
  %625 = vmatpush1.msra.mxu0 0.0
  %626 = vmatprep.subr.mxu0 0.0
  %627 = vmatpush1.msra.mxu0 0.0
  %628 = vmatprep.subr.mxu0 0.0
  %629 = vmatpush1.msra.mxu0 0.0
  %630 = vmatprep.subr.mxu0 0.0
  %631 = vmatpush1.msra.mxu0 0.0
  %632 = vmatprep.subr.mxu0 0.0
  %633 = vmatpush1.msra.mxu0 0.0
  %634 = vmatprep.subr.mxu0 0.0
  %635 = vmatpush1.msra.mxu0 0.0
  %636 = vmatprep.subr.mxu0 0.0
  %637 = vmatpush1.msra.mxu0 0.0
  %638 = vmatprep.subr.mxu0 0.0
  %639 = vmatpush1.msra.mxu0 0.0
  %640 = vmatprep.subr.mxu0 0.0
  %641 = vmatpush1.msra.mxu0 0.0
  %642 = vmatprep.subr.mxu0 0.0
  %643 = vmatpush1.msra.mxu0 0.0
  %644 = vmatprep.subr.mxu0 0.0
  %645 = vmatpush1.msra.mxu0 0.0
  %646 = vmatprep.subr.mxu0 0.0
  %647 = vmatpush1.msra.mxu0 0.0
  %648 = vmatprep.subr.mxu0 0.0
  %649 = vmatpush1.msra.mxu0 0.0
  %650 = vmatprep.mubr.f32.mxu0 0.0
  %v651 = vand.u32 %v37, 4294901760
  %v652 = vsub.f32 %v37, %v651
  %v653 = vand.u32 %v652, 4294901760
  %v654 = vsub.f32 %v652, %v653
  %v655 = vand.u32 %v654, 4294901760
  %656 = vmatmul.mubr.f32.gmra.mrb[0].mxu0 %v655
  %v657 = vpop.f32.mrb[0].mxu0
  %v658 = vadd.f32 %v29, %v657
  %v659 = vpop.f32.mrb[0].mxu0
  %v660 = vadd.f32 %v30, %v659
  %661 = vmatprep.mubr.f32.mxu0 0.0
  %v662 = vand.u32 %v40, 4294901760
  %v663 = vsub.f32 %v40, %v662
  %v664 = vand.u32 %v663, 4294901760
  %v665 = vsub.f32 %v663, %v664
  %v666 = vand.u32 %v665, 4294901760
  %667 = vmatmul.mubr.f32.gmra.mrb[0].mxu0 %v666
  %v668 = vpop.f32.mrb[0].mxu0
  %v669 = vadd.f32 %v33, %v668
  %v670 = vpop.f32.mrb[0].mxu0
  %v671 = vadd.f32 %v34, %v670
  %672 = vdwg.mxu0
  %v673 = vand.u32 %v22, 4294901760
  %v674 = vsub.f32 %v22, %v673
  %v675 = vand.u32 %v674, 4294901760
  %v676 = vsub.f32 %v674, %v675
  %v677 = vand.u32 %v676, 4294901760
  %678 = vmatprep.subr.mxu0 %v677
  %v679 = vand.u32 %v21, 4294901760
  %v680 = vsub.f32 %v21, %v679
  %v681 = vand.u32 %v680, 4294901760
  %v682 = vsub.f32 %v680, %v681
  %v683 = vand.u32 %v682, 4294901760
  %684 = vmatpush1.msra.mxu0 %v683
  %v685 = vand.u32 %v26, 4294901760
  %v686 = vsub.f32 %v26, %v685
  %v687 = vand.u32 %v686, 4294901760
  %v688 = vsub.f32 %v686, %v687
  %v689 = vand.u32 %v688, 4294901760
  %690 = vmatprep.subr.mxu0 %v689
  %v691 = vand.u32 %v25, 4294901760
  %v692 = vsub.f32 %v25, %v691
  %v693 = vand.u32 %v692, 4294901760
  %v694 = vsub.f32 %v692, %v693
  %v695 = vand.u32 %v694, 4294901760
  %696 = vmatpush1.msra.mxu0 %v695
  %697 = vmatprep.subr.mxu0 0.0
  %698 = vmatpush1.msra.mxu0 0.0
  %699 = vmatprep.subr.mxu0 0.0
  %700 = vmatpush1.msra.mxu0 0.0
  %701 = vmatprep.subr.mxu0 0.0
  %702 = vmatpush1.msra.mxu0 0.0
  %703 = vmatprep.subr.mxu0 0.0
  %704 = vmatpush1.msra.mxu0 0.0
  %705 = vmatprep.subr.mxu0 0.0
  %706 = vmatpush1.msra.mxu0 0.0
  %707 = vmatprep.subr.mxu0 0.0
  %708 = vmatpush1.msra.mxu0 0.0
  %709 = vmatprep.subr.mxu0 0.0
  %710 = vmatpush1.msra.mxu0 0.0
  %711 = vmatprep.subr.mxu0 0.0
  %712 = vmatpush1.msra.mxu0 0.0
  %713 = vmatprep.subr.mxu0 0.0
  %714 = vmatpush1.msra.mxu0 0.0
  %715 = vmatprep.subr.mxu0 0.0
  %716 = vmatpush1.msra.mxu0 0.0
  %717 = vmatprep.subr.mxu0 0.0
  %718 = vmatpush1.msra.mxu0 0.0
  %719 = vmatprep.subr.mxu0 0.0
  %720 = vmatpush1.msra.mxu0 0.0
  %721 = vmatprep.subr.mxu0 0.0
  %722 = vmatpush1.msra.mxu0 0.0
  %723 = vmatprep.subr.mxu0 0.0
  %724 = vmatpush1.msra.mxu0 0.0
  %725 = vmatprep.subr.mxu0 0.0
  %726 = vmatpush1.msra.mxu0 0.0
  %727 = vmatprep.subr.mxu0 0.0
  %728 = vmatpush1.msra.mxu0 0.0
  %729 = vmatprep.subr.mxu0 0.0
  %730 = vmatpush1.msra.mxu0 0.0
  %731 = vmatprep.subr.mxu0 0.0
  %732 = vmatpush1.msra.mxu0 0.0
  %733 = vmatprep.subr.mxu0 0.0
  %734 = vmatpush1.msra.mxu0 0.0
  %735 = vmatprep.subr.mxu0 0.0
  %736 = vmatpush1.msra.mxu0 0.0
  %737 = vmatprep.subr.mxu0 0.0
  %738 = vmatpush1.msra.mxu0 0.0
  %739 = vmatprep.subr.mxu0 0.0
  %740 = vmatpush1.msra.mxu0 0.0
  %741 = vmatprep.subr.mxu0 0.0
  %742 = vmatpush1.msra.mxu0 0.0
  %743 = vmatprep.subr.mxu0 0.0
  %744 = vmatpush1.msra.mxu0 0.0
  %745 = vmatprep.subr.mxu0 0.0
  %746 = vmatpush1.msra.mxu0 0.0
  %747 = vmatprep.subr.mxu0 0.0
  %748 = vmatpush1.msra.mxu0 0.0
  %749 = vmatprep.subr.mxu0 0.0
  %750 = vmatpush1.msra.mxu0 0.0
  %751 = vmatprep.subr.mxu0 0.0
  %752 = vmatpush1.msra.mxu0 0.0
  %753 = vmatprep.subr.mxu0 0.0
  %754 = vmatpush1.msra.mxu0 0.0
  %755 = vmatprep.subr.mxu0 0.0
  %756 = vmatpush1.msra.mxu0 0.0
  %757 = vmatprep.mubr.f32.mxu0 0.0
  %v758 = vand.u32 %v37, 4294901760
  %759 = vmatmul.mubr.f32.gmra.mrb[0].mxu0 %v758
  %v760 = vpop.f32.mrb[0].mxu0
  %v761 = vadd.f32 %v658, %v760
  %v762 = vpop.f32.mrb[0].mxu0
  %v763 = vadd.f32 %v660, %v762
  %764 = vmatprep.mubr.f32.mxu0 0.0
  %v765 = vand.u32 %v40, 4294901760
  %766 = vmatmul.mubr.f32.gmra.mrb[0].mxu0 %v765
  %v767 = vpop.f32.mrb[0].mxu0
  %v768 = vadd.f32 %v669, %v767
  %v769 = vpop.f32.mrb[0].mxu0
  %v770 = vadd.f32 %v671, %v769
  %771 = vdwg.mxu0
  %v772 = vand.u32 %v22, 4294901760
  %v773 = vsub.f32 %v22, %v772
  %774 = vmatprep.subr.mxu0 %v773
  %v775 = vand.u32 %v21, 4294901760
  %v776 = vsub.f32 %v21, %v775
  %777 = vmatpush1.msra.mxu0 %v776
  %v778 = vand.u32 %v26, 4294901760
  %v779 = vsub.f32 %v26, %v778
  %780 = vmatprep.subr.mxu0 %v779
  %v781 = vand.u32 %v25, 4294901760
  %v782 = vsub.f32 %v25, %v781
  %783 = vmatpush1.msra.mxu0 %v782
  %784 = vmatprep.subr.mxu0 0.0
  %785 = vmatpush1.msra.mxu0 0.0
  %786 = vmatprep.subr.mxu0 0.0
  %787 = vmatpush1.msra.mxu0 0.0
  %788 = vmatprep.subr.mxu0 0.0
  %789 = vmatpush1.msra.mxu0 0.0
  %790 = vmatprep.subr.mxu0 0.0
  %791 = vmatpush1.msra.mxu0 0.0
  %792 = vmatprep.subr.mxu0 0.0
  %793 = vmatpush1.msra.mxu0 0.0
  %794 = vmatprep.subr.mxu0 0.0
  %795 = vmatpush1.msra.mxu0 0.0
  %796 = vmatprep.subr.mxu0 0.0
  %797 = vmatpush1.msra.mxu0 0.0
  %798 = vmatprep.subr.mxu0 0.0
  %799 = vmatpush1.msra.mxu0 0.0
  %800 = vmatprep.subr.mxu0 0.0
  %801 = vmatpush1.msra.mxu0 0.0
  %802 = vmatprep.subr.mxu0 0.0
  %803 = vmatpush1.msra.mxu0 0.0
  %804 = vmatprep.subr.mxu0 0.0
  %805 = vmatpush1.msra.mxu0 0.0
  %806 = vmatprep.subr.mxu0 0.0
  %807 = vmatpush1.msra.mxu0 0.0
  %808 = vmatprep.subr.mxu0 0.0
  %809 = vmatpush1.msra.mxu0 0.0
  %810 = vmatprep.subr.mxu0 0.0
  %811 = vmatpush1.msra.mxu0 0.0
  %812 = vmatprep.subr.mxu0 0.0
  %813 = vmatpush1.msra.mxu0 0.0
  %814 = vmatprep.subr.mxu0 0.0
  %815 = vmatpush1.msra.mxu0 0.0
  %816 = vmatprep.subr.mxu0 0.0
  %817 = vmatpush1.msra.mxu0 0.0
  %818 = vmatprep.subr.mxu0 0.0
  %819 = vmatpush1.msra.mxu0 0.0
  %820 = vmatprep.subr.mxu0 0.0
  %821 = vmatpush1.msra.mxu0 0.0
  %822 = vmatprep.subr.mxu0 0.0
  %823 = vmatpush1.msra.mxu0 0.0
  %824 = vmatprep.subr.mxu0 0.0
  %825 = vmatpush1.msra.mxu0 0.0
  %826 = vmatprep.subr.mxu0 0.0
  %827 = vmatpush1.msra.mxu0 0.0
  %828 = vmatprep.subr.mxu0 0.0
  %829 = vmatpush1.msra.mxu0 0.0
  %830 = vmatprep.subr.mxu0 0.0
  %831 = vmatpush1.msra.mxu0 0.0
  %832 = vmatprep.subr.mxu0 0.0
  %833 = vmatpush1.msra.mxu0 0.0
  %834 = vmatprep.subr.mxu0 0.0
  %835 = vmatpush1.msra.mxu0 0.0
  %836 = vmatprep.subr.mxu0 0.0
  %837 = vmatpush1.msra.mxu0 0.0
  %838 = vmatprep.subr.mxu0 0.0
  %839 = vmatpush1.msra.mxu0 0.0
  %840 = vmatprep.subr.mxu0 0.0
  %841 = vmatpush1.msra.mxu0 0.0
  %842 = vmatprep.subr.mxu0 0.0
  %843 = vmatpush1.msra.mxu0 0.0
  %844 = vmatprep.mubr.f32.mxu0 0.0
  %v845 = vand.u32 %v37, 4294901760
  %v846 = vsub.f32 %v37, %v845
  %847 = vmatmul.mubr.f32.gmra.mrb[0].mxu0 %v846
  %v848 = vpop.f32.mrb[0].mxu0
  %v849 = vadd.f32 %v761, %v848
  %v850 = vpop.f32.mrb[0].mxu0
  %v851 = vadd.f32 %v763, %v850
  %852 = vmatprep.mubr.f32.mxu0 0.0
  %v853 = vand.u32 %v40, 4294901760
  %v854 = vsub.f32 %v40, %v853
  %855 = vmatmul.mubr.f32.gmra.mrb[0].mxu0 %v854
  %v856 = vpop.f32.mrb[0].mxu0
  %v857 = vadd.f32 %v768, %v856
  %v858 = vpop.f32.mrb[0].mxu0
  %v859 = vadd.f32 %v770, %v858
  %860 = vdwg.mxu0
  %v861 = vand.u32 %v22, 4294901760
  %862 = vmatprep.subr.mxu0 %v861
  %v863 = vand.u32 %v21, 4294901760
  %864 = vmatpush1.msra.mxu0 %v863
  %v865 = vand.u32 %v26, 4294901760
  %866 = vmatprep.subr.mxu0 %v865
  %v867 = vand.u32 %v25, 4294901760
  %868 = vmatpush1.msra.mxu0 %v867
  %869 = vmatprep.subr.mxu0 0.0
  %870 = vmatpush1.msra.mxu0 0.0
  %871 = vmatprep.subr.mxu0 0.0
  %872 = vmatpush1.msra.mxu0 0.0
  %873 = vmatprep.subr.mxu0 0.0
  %874 = vmatpush1.msra.mxu0 0.0
  %875 = vmatprep.subr.mxu0 0.0
  %876 = vmatpush1.msra.mxu0 0.0
  %877 = vmatprep.subr.mxu0 0.0
  %878 = vmatpush1.msra.mxu0 0.0
  %879 = vmatprep.subr.mxu0 0.0
  %880 = vmatpush1.msra.mxu0 0.0
  %881 = vmatprep.subr.mxu0 0.0
  %882 = vmatpush1.msra.mxu0 0.0
  %883 = vmatprep.subr.mxu0 0.0
  %884 = vmatpush1.msra.mxu0 0.0
  %885 = vmatprep.subr.mxu0 0.0
  %886 = vmatpush1.msra.mxu0 0.0
  %887 = vmatprep.subr.mxu0 0.0
  %888 = vmatpush1.msra.mxu0 0.0
  %889 = vmatprep.subr.mxu0 0.0
  %890 = vmatpush1.msra.mxu0 0.0
  %891 = vmatprep.subr.mxu0 0.0
  %892 = vmatpush1.msra.mxu0 0.0
  %893 = vmatprep.subr.mxu0 0.0
  %894 = vmatpush1.msra.mxu0 0.0
  %895 = vmatprep.subr.mxu0 0.0
  %896 = vmatpush1.msra.mxu0 0.0
  %897 = vmatprep.subr.mxu0 0.0
  %898 = vmatpush1.msra.mxu0 0.0
  %899 = vmatprep.subr.mxu0 0.0
  %900 = vmatpush1.msra.mxu0 0.0
  %901 = vmatprep.subr.mxu0 0.0
  %902 = vmatpush1.msra.mxu0 0.0
  %903 = vmatprep.subr.mxu0 0.0
  %904 = vmatpush1.msra.mxu0 0.0
  %905 = vmatprep.subr.mxu0 0.0
  %906 = vmatpush1.msra.mxu0 0.0
  %907 = vmatprep.subr.mxu0 0.0
  %908 = vmatpush1.msra.mxu0 0.0
  %909 = vmatprep.subr.mxu0 0.0
  %910 = vmatpush1.msra.mxu0 0.0
  %911 = vmatprep.subr.mxu0 0.0
  %912 = vmatpush1.msra.mxu0 0.0
  %913 = vmatprep.subr.mxu0 0.0
  %914 = vmatpush1.msra.mxu0 0.0
  %915 = vmatprep.subr.mxu0 0.0
  %916 = vmatpush1.msra.mxu0 0.0
  %917 = vmatprep.subr.mxu0 0.0
  %918 = vmatpush1.msra.mxu0 0.0
  %919 = vmatprep.subr.mxu0 0.0
  %920 = vmatpush1.msra.mxu0 0.0
  %921 = vmatprep.subr.mxu0 0.0
  %922 = vmatpush1.msra.mxu0 0.0
  %923 = vmatprep.subr.mxu0 0.0
  %924 = vmatpush1.msra.mxu0 0.0
  %925 = vmatprep.subr.mxu0 0.0
  %926 = vmatpush1.msra.mxu0 0.0
  %927 = vmatprep.subr.mxu0 0.0
  %928 = vmatpush1.msra.mxu0 0.0
  %929 = vmatprep.mubr.f32.mxu0 0.0
  %v930 = vand.u32 %v37, 4294901760
  %v931 = vsub.f32 %v37, %v930
  %v932 = vand.u32 %v931, 4294901760
  %933 = vmatmul.mubr.f32.gmra.mrb[0].mxu0 %v932
  %v934 = vpop.f32.mrb[0].mxu0
  %v935 = vadd.f32 %v849, %v934
  %v936 = vpop.f32.mrb[0].mxu0
  %v937 = vadd.f32 %v851, %v936
  %938 = vmatprep.mubr.f32.mxu0 0.0
  %v939 = vand.u32 %v40, 4294901760
  %v940 = vsub.f32 %v40, %v939
  %v941 = vand.u32 %v940, 4294901760
  %942 = vmatmul.mubr.f32.gmra.mrb[0].mxu0 %v941
  %v943 = vpop.f32.mrb[0].mxu0
  %v944 = vadd.f32 %v857, %v943
  %v945 = vpop.f32.mrb[0].mxu0
  %v946 = vadd.f32 %v859, %v945
  %947 = vdwg.mxu0
  %v948 = vand.u32 %v22, 4294901760
  %v949 = vsub.f32 %v22, %v948
  %v950 = vand.u32 %v949, 4294901760
  %951 = vmatprep.subr.mxu0 %v950
  %v952 = vand.u32 %v21, 4294901760
  %v953 = vsub.f32 %v21, %v952
  %v954 = vand.u32 %v953, 4294901760
  %955 = vmatpush1.msra.mxu0 %v954
  %v956 = vand.u32 %v26, 4294901760
  %v957 = vsub.f32 %v26, %v956
  %v958 = vand.u32 %v957, 4294901760
  %959 = vmatprep.subr.mxu0 %v958
  %v960 = vand.u32 %v25, 4294901760
  %v961 = vsub.f32 %v25, %v960
  %v962 = vand.u32 %v961, 4294901760
  %963 = vmatpush1.msra.mxu0 %v962
  %964 = vmatprep.subr.mxu0 0.0
  %965 = vmatpush1.msra.mxu0 0.0
  %966 = vmatprep.subr.mxu0 0.0
  %967 = vmatpush1.msra.mxu0 0.0
  %968 = vmatprep.subr.mxu0 0.0
  %969 = vmatpush1.msra.mxu0 0.0
  %970 = vmatprep.subr.mxu0 0.0
  %971 = vmatpush1.msra.mxu0 0.0
  %972 = vmatprep.subr.mxu0 0.0
  %973 = vmatpush1.msra.mxu0 0.0
  %974 = vmatprep.subr.mxu0 0.0
  %975 = vmatpush1.msra.mxu0 0.0
  %976 = vmatprep.subr.mxu0 0.0
  %977 = vmatpush1.msra.mxu0 0.0
  %978 = vmatprep.subr.mxu0 0.0
  %979 = vmatpush1.msra.mxu0 0.0
  %980 = vmatprep.subr.mxu0 0.0
  %981 = vmatpush1.msra.mxu0 0.0
  %982 = vmatprep.subr.mxu0 0.0
  %983 = vmatpush1.msra.mxu0 0.0
  %984 = vmatprep.subr.mxu0 0.0
  %985 = vmatpush1.msra.mxu0 0.0
  %986 = vmatprep.subr.mxu0 0.0
  %987 = vmatpush1.msra.mxu0 0.0
  %988 = vmatprep.subr.mxu0 0.0
  %989 = vmatpush1.msra.mxu0 0.0
  %990 = vmatprep.subr.mxu0 0.0
  %991 = vmatpush1.msra.mxu0 0.0
  %992 = vmatprep.subr.mxu0 0.0
  %993 = vmatpush1.msra.mxu0 0.0
  %994 = vmatprep.subr.mxu0 0.0
  %995 = vmatpush1.msra.mxu0 0.0
  %996 = vmatprep.subr.mxu0 0.0
  %997 = vmatpush1.msra.mxu0 0.0
  %998 = vmatprep.subr.mxu0 0.0
  %999 = vmatpush1.msra.mxu0 0.0
  %1000 = vmatprep.subr.mxu0 0.0
  %1001 = vmatpush1.msra.mxu0 0.0
  %1002 = vmatprep.subr.mxu0 0.0
  %1003 = vmatpush1.msra.mxu0 0.0
  %1004 = vmatprep.subr.mxu0 0.0
  %1005 = vmatpush1.msra.mxu0 0.0
  %1006 = vmatprep.subr.mxu0 0.0
  %1007 = vmatpush1.msra.mxu0 0.0
  %1008 = vmatprep.subr.mxu0 0.0
  %1009 = vmatpush1.msra.mxu0 0.0
  %1010 = vmatprep.subr.mxu0 0.0
  %1011 = vmatpush1.msra.mxu0 0.0
  %1012 = vmatprep.subr.mxu0 0.0
  %1013 = vmatpush1.msra.mxu0 0.0
  %1014 = vmatprep.subr.mxu0 0.0
  %1015 = vmatpush1.msra.mxu0 0.0
  %1016 = vmatprep.subr.mxu0 0.0
  %1017 = vmatpush1.msra.mxu0 0.0
  %1018 = vmatprep.subr.mxu0 0.0
  %1019 = vmatpush1.msra.mxu0 0.0
  %1020 = vmatprep.subr.mxu0 0.0
  %1021 = vmatpush1.msra.mxu0 0.0
  %1022 = vmatprep.subr.mxu0 0.0
  %1023 = vmatpush1.msra.mxu0 0.0
  %1024 = vmatprep.mubr.f32.mxu0 0.0
  %v1025 = vand.u32 %v37, 4294901760
  %1026 = vmatmul.mubr.f32.gmra.mrb[0].mxu0 %v1025
  %v1027 = vpop.f32.mrb[0].mxu0
  %v1028 = vadd.f32 %v935, %v1027
  %v1029 = vpop.f32.mrb[0].mxu0
  %v1030 = vadd.f32 %v937, %v1029
  %1031 = vmatprep.mubr.f32.mxu0 0.0
  %v1032 = vand.u32 %v40, 4294901760
  %1033 = vmatmul.mubr.f32.gmra.mrb[0].mxu0 %v1032
  %v1034 = vpop.f32.mrb[0].mxu0
  %v1035 = vadd.f32 %v944, %v1034
  %v1036 = vpop.f32.mrb[0].mxu0
  %v1037 = vadd.f32 %v946, %v1036
  %1038 = vdwg.mxu0
  %v1039 = vand.u32 %v22, 4294901760
  %1040 = vmatprep.subr.mxu0 %v1039
  %v1041 = vand.u32 %v21, 4294901760
  %1042 = vmatpush1.msra.mxu0 %v1041
  %v1043 = vand.u32 %v26, 4294901760
  %1044 = vmatprep.subr.mxu0 %v1043
  %v1045 = vand.u32 %v25, 4294901760
  %1046 = vmatpush1.msra.mxu0 %v1045
  %1047 = vmatprep.subr.mxu0 0.0
  %1048 = vmatpush1.msra.mxu0 0.0
  %1049 = vmatprep.subr.mxu0 0.0
  %1050 = vmatpush1.msra.mxu0 0.0
  %1051 = vmatprep.subr.mxu0 0.0
  %1052 = vmatpush1.msra.mxu0 0.0
  %1053 = vmatprep.subr.mxu0 0.0
  %1054 = vmatpush1.msra.mxu0 0.0
  %1055 = vmatprep.subr.mxu0 0.0
  %1056 = vmatpush1.msra.mxu0 0.0
  %1057 = vmatprep.subr.mxu0 0.0
  %1058 = vmatpush1.msra.mxu0 0.0
  %1059 = vmatprep.subr.mxu0 0.0
  %1060 = vmatpush1.msra.mxu0 0.0
  %1061 = vmatprep.subr.mxu0 0.0
  %1062 = vmatpush1.msra.mxu0 0.0
  %1063 = vmatprep.subr.mxu0 0.0
  %1064 = vmatpush1.msra.mxu0 0.0
  %1065 = vmatprep.subr.mxu0 0.0
  %1066 = vmatpush1.msra.mxu0 0.0
  %1067 = vmatprep.subr.mxu0 0.0
  %1068 = vmatpush1.msra.mxu0 0.0
  %1069 = vmatprep.subr.mxu0 0.0
  %1070 = vmatpush1.msra.mxu0 0.0
  %1071 = vmatprep.subr.mxu0 0.0
  %1072 = vmatpush1.msra.mxu0 0.0
  %1073 = vmatprep.subr.mxu0 0.0
  %1074 = vmatpush1.msra.mxu0 0.0
  %1075 = vmatprep.subr.mxu0 0.0
  %1076 = vmatpush1.msra.mxu0 0.0
  %1077 = vmatprep.subr.mxu0 0.0
  %1078 = vmatpush1.msra.mxu0 0.0
  %1079 = vmatprep.subr.mxu0 0.0
  %1080 = vmatpush1.msra.mxu0 0.0
  %1081 = vmatprep.subr.mxu0 0.0
  %1082 = vmatpush1.msra.mxu0 0.0
  %1083 = vmatprep.subr.mxu0 0.0
  %1084 = vmatpush1.msra.mxu0 0.0
  %1085 = vmatprep.subr.mxu0 0.0
  %1086 = vmatpush1.msra.mxu0 0.0
  %1087 = vmatprep.subr.mxu0 0.0
  %1088 = vmatpush1.msra.mxu0 0.0
  %1089 = vmatprep.subr.mxu0 0.0
  %1090 = vmatpush1.msra.mxu0 0.0
  %1091 = vmatprep.subr.mxu0 0.0
  %1092 = vmatpush1.msra.mxu0 0.0
  %1093 = vmatprep.subr.mxu0 0.0
  %1094 = vmatpush1.msra.mxu0 0.0
  %1095 = vmatprep.subr.mxu0 0.0
  %1096 = vmatpush1.msra.mxu0 0.0
  %1097 = vmatprep.subr.mxu0 0.0
  %1098 = vmatpush1.msra.mxu0 0.0
  %1099 = vmatprep.subr.mxu0 0.0
  %1100 = vmatpush1.msra.mxu0 0.0
  %1101 = vmatprep.subr.mxu0 0.0
  %1102 = vmatpush1.msra.mxu0 0.0
  %1103 = vmatprep.subr.mxu0 0.0
  %1104 = vmatpush1.msra.mxu0 0.0
  %1105 = vmatprep.subr.mxu0 0.0
  %1106 = vmatpush1.msra.mxu0 0.0
  %1107 = vmatprep.mubr.f32.mxu0 0.0
  %v1108 = vand.u32 %v37, 4294901760
  %1109 = vmatmul.mubr.f32.gmra.mrb[0].mxu0 %v1108
  %v1110 = vpop.f32.mrb[0].mxu0
  %v1111 = vadd.f32 %v1028, %v1110
  %v1112 = vpop.f32.mrb[0].mxu0
  %v1113 = vadd.f32 %v1030, %v1112
  %1114 = vmatprep.mubr.f32.mxu0 0.0
  %v1115 = vand.u32 %v40, 4294901760
  %1116 = vmatmul.mubr.f32.gmra.mrb[0].mxu0 %v1115
  %v1117 = vpop.f32.mrb[0].mxu0
  %v1118 = vadd.f32 %v1035, %v1117
  %v1119 = vpop.f32.mrb[0].mxu0
  %v1120 = vadd.f32 %v1037, %v1119
  %1121 = vdwg.mxu0
  %v1122 = vld [vmem:[%s3] sm:$0xf]
  %v1123 = vld [vmem:[%s3 + $0x4] sm:$0xf]
  %v1124 = vld [vmem:[%s3 + $0x8] sm:$0xf]
  %v1125 = vld [vmem:[%s3 + $0xc] sm:$0xf]
  %v1130 = vlaneseq
  %v1131 = vshrl.u32 %v1130, 7
  %v1132 = vsub.s32 0, %v1131
  %v1133 = vrot.slane %v1122, %v1132
  %v1134 = vlaneseq
  %v1135 = vshrl.u32 %v1134, 7
  %v1136 = vsub.s32 1, %v1135
  %v1137 = vrot.slane %v1122, %v1136
  %v1138 = vlaneseq
  %v1139 = vshrl.u32 %v1138, 7
  %v1140 = vsub.s32 2, %v1139
  %v1141 = vrot.slane %v1122, %v1140
  %v1142 = vlaneseq
  %v1143 = vshrl.u32 %v1142, 7
  %v1144 = vsub.s32 3, %v1143
  %v1145 = vrot.slane %v1122, %v1144
  %v1146 = vlaneseq
  %v1147 = vshrl.u32 %v1146, 7
  %v1148 = vsub.s32 0, %v1147
  %v1149 = vrot.slane %v1123, %v1148
  %v1150 = vlaneseq
  %v1151 = vshrl.u32 %v1150, 7
  %v1152 = vsub.s32 1, %v1151
  %v1153 = vrot.slane %v1123, %v1152
  %v1154 = vlaneseq
  %v1155 = vshrl.u32 %v1154, 7
  %v1156 = vsub.s32 2, %v1155
  %v1157 = vrot.slane %v1123, %v1156
  %v1158 = vlaneseq
  %v1159 = vshrl.u32 %v1158, 7
  %v1160 = vsub.s32 3, %v1159
  %v1161 = vrot.slane %v1123, %v1160
  %v1162 = vlaneseq
  %v1163 = vshrl.u32 %v1162, 7
  %v1164 = vsub.s32 0, %v1163
  %v1165 = vrot.slane %v1124, %v1164
  %v1166 = vlaneseq
  %v1167 = vshrl.u32 %v1166, 7
  %v1168 = vsub.s32 1, %v1167
  %v1169 = vrot.slane %v1124, %v1168
  %v1170 = vlaneseq
  %v1171 = vshrl.u32 %v1170, 7
  %v1172 = vsub.s32 2, %v1171
  %v1173 = vrot.slane %v1124, %v1172
  %v1174 = vlaneseq
  %v1175 = vshrl.u32 %v1174, 7
  %v1176 = vsub.s32 3, %v1175
  %v1177 = vrot.slane %v1124, %v1176
  %v1178 = vlaneseq
  %v1179 = vshrl.u32 %v1178, 7
  %v1180 = vsub.s32 0, %v1179
  %v1181 = vrot.slane %v1125, %v1180
  %v1182 = vlaneseq
  %v1183 = vshrl.u32 %v1182, 7
  %v1184 = vsub.s32 1, %v1183
  %v1185 = vrot.slane %v1125, %v1184
  %v1186 = vlaneseq
  %v1187 = vshrl.u32 %v1186, 7
  %v1188 = vsub.s32 2, %v1187
  %v1189 = vrot.slane %v1125, %v1188
  %v1190 = vlaneseq
  %v1191 = vshrl.u32 %v1190, 7
  %v1192 = vsub.s32 3, %v1191
  %v1193 = vrot.slane %v1125, %v1192
  %v1210 = vmul.f32 %v571, %v1133
  %v1211 = vmul.f32 %v573, %v1137
  %v1212 = vmul.f32 %v1111, %v1141
  %v1213 = vmul.f32 %v1113, %v1145
  %v1214 = vmul.f32 %v578, %v1133
  %v1215 = vmul.f32 %v580, %v1137
  %v1216 = vmul.f32 %v1118, %v1141
  %v1217 = vmul.f32 %v1120, %v1145
  %v1218 = vmul.f32 %v571, %v1149
  %v1219 = vmul.f32 %v573, %v1153
  %v1220 = vmul.f32 %v1111, %v1157
  %v1221 = vmul.f32 %v1113, %v1161
  %v1222 = vmul.f32 %v578, %v1149
  %v1223 = vmul.f32 %v580, %v1153
  %v1224 = vmul.f32 %v1118, %v1157
  %v1225 = vmul.f32 %v1120, %v1161
  %v1226 = vmul.f32 %v571, %v1165
  %v1227 = vmul.f32 %v573, %v1169
  %v1228 = vmul.f32 %v1111, %v1173
  %v1229 = vmul.f32 %v1113, %v1177
  %v1230 = vmul.f32 %v578, %v1165
  %v1231 = vmul.f32 %v580, %v1169
  %v1232 = vmul.f32 %v1118, %v1173
  %v1233 = vmul.f32 %v1120, %v1177
  %v1234 = vmul.f32 %v571, %v1181
  %v1235 = vmul.f32 %v573, %v1185
  %v1236 = vmul.f32 %v1111, %v1189
  %v1237 = vmul.f32 %v1113, %v1193
  %v1238 = vmul.f32 %v578, %v1181
  %v1239 = vmul.f32 %v580, %v1185
  %v1240 = vmul.f32 %v1118, %v1189
  %v1241 = vmul.f32 %v1120, %v1193
  %1242 = vst [vmem:[%s4] sm:$0xff] %v1210
  %1243 = vst [vmem:[%s4 + $0x8] sm:$0xff] %v1211
  %1244 = vst [vmem:[%s4 + $0x10] sm:$0xff] %v1212
  %1245 = vst [vmem:[%s4 + $0x18] sm:$0xff] %v1213
  %1246 = vst [vmem:[%s4 + $0x20] sm:$0xff] %v1214
  %1247 = vst [vmem:[%s4 + $0x28] sm:$0xff] %v1215
  %1248 = vst [vmem:[%s4 + $0x30] sm:$0xff] %v1216
  %1249 = vst [vmem:[%s4 + $0x38] sm:$0xff] %v1217
  %1250 = vst [vmem:[%s4 + $0x40] sm:$0xff] %v1218
  %1251 = vst [vmem:[%s4 + $0x48] sm:$0xff] %v1219
  %1252 = vst [vmem:[%s4 + $0x50] sm:$0xff] %v1220
  %1253 = vst [vmem:[%s4 + $0x58] sm:$0xff] %v1221
  %1254 = vst [vmem:[%s4 + $0x60] sm:$0xff] %v1222
  %1255 = vst [vmem:[%s4 + $0x68] sm:$0xff] %v1223
  %1256 = vst [vmem:[%s4 + $0x70] sm:$0xff] %v1224
  %1257 = vst [vmem:[%s4 + $0x78] sm:$0xff] %v1225
  %1258 = vst [vmem:[%s4 + $0x80] sm:$0xff] %v1226
  %1259 = vst [vmem:[%s4 + $0x88] sm:$0xff] %v1227
  %1260 = vst [vmem:[%s4 + $0x90] sm:$0xff] %v1228
  %1261 = vst [vmem:[%s4 + $0x98] sm:$0xff] %v1229
  %1262 = vst [vmem:[%s4 + $0xa0] sm:$0xff] %v1230
  %1263 = vst [vmem:[%s4 + $0xa8] sm:$0xff] %v1231
  %1264 = vst [vmem:[%s4 + $0xb0] sm:$0xff] %v1232
  %1265 = vst [vmem:[%s4 + $0xb8] sm:$0xff] %v1233
  %1266 = vst [vmem:[%s4 + $0xc0] sm:$0xff] %v1234
  %1267 = vst [vmem:[%s4 + $0xc8] sm:$0xff] %v1235
  %1268 = vst [vmem:[%s4 + $0xd0] sm:$0xff] %v1236
  %1269 = vst [vmem:[%s4 + $0xd8] sm:$0xff] %v1237
  %1270 = vst [vmem:[%s4 + $0xe0] sm:$0xff] %v1238
  %1271 = vst [vmem:[%s4 + $0xe8] sm:$0xff] %v1239
  %1272 = vst [vmem:[%s4 + $0xf0] sm:$0xff] %v1240
  %1273 = vst [vmem:[%s4 + $0xf8] sm:$0xff] %v1241
  %s1274 = scalar_lea.vmem %s0, 16
  %v1275 = vld [vmem:[%s1274] sm:$0xff]
  %v1276 = vld [vmem:[%s1274 + $0x8] sm:$0xff]
  %v1277 = vld [vmem:[%s1] sm:$0xff]
  %v1278 = vld [vmem:[%s1 + $0x8] sm:$0xff]
  %v1279 = vld [vmem:[%s1 + $0x10] sm:$0xff]
  %v1280 = vld [vmem:[%s1 + $0x18] sm:$0xff]
  %v1281 = vld [vmem:[%s1 + $0x20] sm:$0xff]
  %v1282 = vld [vmem:[%s1 + $0x28] sm:$0xff]
  %v1283 = vld [vmem:[%s1 + $0x30] sm:$0xff]
  %v1284 = vld [vmem:[%s1 + $0x38] sm:$0xff]
  %v1285 = vld [vmem:[%s2] sm:$0xff]
  %v1286 = vld [vmem:[%s2 + $0x8] sm:$0xff]
  %v1287 = vld [vmem:[%s2 + $0x10] sm:$0xff]
  %v1288 = vld [vmem:[%s2 + $0x18] sm:$0xff]
  %v1289 = vld [vmem:[%s2 + $0x20] sm:$0xff]
  %v1290 = vld [vmem:[%s2 + $0x28] sm:$0xff]
  %v1291 = vld [vmem:[%s2 + $0x30] sm:$0xff]
  %v1292 = vld [vmem:[%s2 + $0x38] sm:$0xff]
  %v1294 = vsel %vm35, %v1275, 0
  %v1297 = vsel %vm35, %v1276, 0
  %v1299 = vand.u32 %v1278, 4294901760
  %1300 = vmatprep.subr.mxu0 %v1299
  %v1301 = vand.u32 %v1277, 4294901760
  %1302 = vmatpush1.msra.mxu0 %v1301
  %v1303 = vand.u32 %v1282, 4294901760
  %1304 = vmatprep.subr.mxu0 %v1303
  %v1305 = vand.u32 %v1281, 4294901760
  %1306 = vmatpush1.msra.mxu0 %v1305
  %1307 = vmatprep.subr.mxu0 0.0
  %1308 = vmatpush1.msra.mxu0 0.0
  %1309 = vmatprep.subr.mxu0 0.0
  %1310 = vmatpush1.msra.mxu0 0.0
  %1311 = vmatprep.subr.mxu0 0.0
  %1312 = vmatpush1.msra.mxu0 0.0
  %1313 = vmatprep.subr.mxu0 0.0
  %1314 = vmatpush1.msra.mxu0 0.0
  %1315 = vmatprep.subr.mxu0 0.0
  %1316 = vmatpush1.msra.mxu0 0.0
  %1317 = vmatprep.subr.mxu0 0.0
  %1318 = vmatpush1.msra.mxu0 0.0
  %1319 = vmatprep.subr.mxu0 0.0
  %1320 = vmatpush1.msra.mxu0 0.0
  %1321 = vmatprep.subr.mxu0 0.0
  %1322 = vmatpush1.msra.mxu0 0.0
  %1323 = vmatprep.subr.mxu0 0.0
  %1324 = vmatpush1.msra.mxu0 0.0
  %1325 = vmatprep.subr.mxu0 0.0
  %1326 = vmatpush1.msra.mxu0 0.0
  %1327 = vmatprep.subr.mxu0 0.0
  %1328 = vmatpush1.msra.mxu0 0.0
  %1329 = vmatprep.subr.mxu0 0.0
  %1330 = vmatpush1.msra.mxu0 0.0
  %1331 = vmatprep.subr.mxu0 0.0
  %1332 = vmatpush1.msra.mxu0 0.0
  %1333 = vmatprep.subr.mxu0 0.0
  %1334 = vmatpush1.msra.mxu0 0.0
  %1335 = vmatprep.subr.mxu0 0.0
  %1336 = vmatpush1.msra.mxu0 0.0
  %1337 = vmatprep.subr.mxu0 0.0
  %1338 = vmatpush1.msra.mxu0 0.0
  %1339 = vmatprep.subr.mxu0 0.0
  %1340 = vmatpush1.msra.mxu0 0.0
  %1341 = vmatprep.subr.mxu0 0.0
  %1342 = vmatpush1.msra.mxu0 0.0
  %1343 = vmatprep.subr.mxu0 0.0
  %1344 = vmatpush1.msra.mxu0 0.0
  %1345 = vmatprep.subr.mxu0 0.0
  %1346 = vmatpush1.msra.mxu0 0.0
  %1347 = vmatprep.subr.mxu0 0.0
  %1348 = vmatpush1.msra.mxu0 0.0
  %1349 = vmatprep.subr.mxu0 0.0
  %1350 = vmatpush1.msra.mxu0 0.0
  %1351 = vmatprep.subr.mxu0 0.0
  %1352 = vmatpush1.msra.mxu0 0.0
  %1353 = vmatprep.subr.mxu0 0.0
  %1354 = vmatpush1.msra.mxu0 0.0
  %1355 = vmatprep.subr.mxu0 0.0
  %1356 = vmatpush1.msra.mxu0 0.0
  %1357 = vmatprep.subr.mxu0 0.0
  %1358 = vmatpush1.msra.mxu0 0.0
  %1359 = vmatprep.subr.mxu0 0.0
  %1360 = vmatpush1.msra.mxu0 0.0
  %1361 = vmatprep.subr.mxu0 0.0
  %1362 = vmatpush1.msra.mxu0 0.0
  %1363 = vmatprep.subr.mxu0 0.0
  %1364 = vmatpush1.msra.mxu0 0.0
  %1365 = vmatprep.subr.mxu0 0.0
  %1366 = vmatpush1.msra.mxu0 0.0
  %1367 = vmatprep.mubr.f32.mxu0 0.0
  %v1368 = vand.u32 %v1294, 4294901760
  %v1369 = vsub.f32 %v1294, %v1368
  %v1370 = vand.u32 %v1369, 4294901760
  %v1371 = vsub.f32 %v1369, %v1370
  %v1372 = vand.u32 %v1371, 4294901760
  %1373 = vmatmul.mubr.f32.gmra.mrb[0].mxu0 %v1372
  %v1374 = vpop.f32.mrb[0].mxu0
  %v1375 = vadd.f32 %v1285, %v1374
  %v1376 = vpop.f32.mrb[0].mxu0
  %v1377 = vadd.f32 %v1286, %v1376
  %1378 = vmatprep.mubr.f32.mxu0 0.0
  %v1379 = vand.u32 %v1297, 4294901760
  %v1380 = vsub.f32 %v1297, %v1379
  %v1381 = vand.u32 %v1380, 4294901760
  %v1382 = vsub.f32 %v1380, %v1381
  %v1383 = vand.u32 %v1382, 4294901760
  %1384 = vmatmul.mubr.f32.gmra.mrb[0].mxu0 %v1383
  %v1385 = vpop.f32.mrb[0].mxu0
  %v1386 = vadd.f32 %v1289, %v1385
  %v1387 = vpop.f32.mrb[0].mxu0
  %v1388 = vadd.f32 %v1290, %v1387
  %1389 = vdwg.mxu0
  %v1390 = vand.u32 %v1278, 4294901760
  %v1391 = vsub.f32 %v1278, %v1390
  %v1392 = vand.u32 %v1391, 4294901760
  %v1393 = vsub.f32 %v1391, %v1392
  %v1394 = vand.u32 %v1393, 4294901760
  %1395 = vmatprep.subr.mxu0 %v1394
  %v1396 = vand.u32 %v1277, 4294901760
  %v1397 = vsub.f32 %v1277, %v1396
  %v1398 = vand.u32 %v1397, 4294901760
  %v1399 = vsub.f32 %v1397, %v1398
  %v1400 = vand.u32 %v1399, 4294901760
  %1401 = vmatpush1.msra.mxu0 %v1400
  %v1402 = vand.u32 %v1282, 4294901760
  %v1403 = vsub.f32 %v1282, %v1402
  %v1404 = vand.u32 %v1403, 4294901760
  %v1405 = vsub.f32 %v1403, %v1404
  %v1406 = vand.u32 %v1405, 4294901760
  %1407 = vmatprep.subr.mxu0 %v1406
  %v1408 = vand.u32 %v1281, 4294901760
  %v1409 = vsub.f32 %v1281, %v1408
  %v1410 = vand.u32 %v1409, 4294901760
  %v1411 = vsub.f32 %v1409, %v1410
  %v1412 = vand.u32 %v1411, 4294901760
  %1413 = vmatpush1.msra.mxu0 %v1412
  %1414 = vmatprep.subr.mxu0 0.0
  %1415 = vmatpush1.msra.mxu0 0.0
  %1416 = vmatprep.subr.mxu0 0.0
  %1417 = vmatpush1.msra.mxu0 0.0
  %1418 = vmatprep.subr.mxu0 0.0
  %1419 = vmatpush1.msra.mxu0 0.0
  %1420 = vmatprep.subr.mxu0 0.0
  %1421 = vmatpush1.msra.mxu0 0.0
  %1422 = vmatprep.subr.mxu0 0.0
  %1423 = vmatpush1.msra.mxu0 0.0
  %1424 = vmatprep.subr.mxu0 0.0
  %1425 = vmatpush1.msra.mxu0 0.0
  %1426 = vmatprep.subr.mxu0 0.0
  %1427 = vmatpush1.msra.mxu0 0.0
  %1428 = vmatprep.subr.mxu0 0.0
  %1429 = vmatpush1.msra.mxu0 0.0
  %1430 = vmatprep.subr.mxu0 0.0
  %1431 = vmatpush1.msra.mxu0 0.0
  %1432 = vmatprep.subr.mxu0 0.0
  %1433 = vmatpush1.msra.mxu0 0.0
  %1434 = vmatprep.subr.mxu0 0.0
  %1435 = vmatpush1.msra.mxu0 0.0
  %1436 = vmatprep.subr.mxu0 0.0
  %1437 = vmatpush1.msra.mxu0 0.0
  %1438 = vmatprep.subr.mxu0 0.0
  %1439 = vmatpush1.msra.mxu0 0.0
  %1440 = vmatprep.subr.mxu0 0.0
  %1441 = vmatpush1.msra.mxu0 0.0
  %1442 = vmatprep.subr.mxu0 0.0
  %1443 = vmatpush1.msra.mxu0 0.0
  %1444 = vmatprep.subr.mxu0 0.0
  %1445 = vmatpush1.msra.mxu0 0.0
  %1446 = vmatprep.subr.mxu0 0.0
  %1447 = vmatpush1.msra.mxu0 0.0
  %1448 = vmatprep.subr.mxu0 0.0
  %1449 = vmatpush1.msra.mxu0 0.0
  %1450 = vmatprep.subr.mxu0 0.0
  %1451 = vmatpush1.msra.mxu0 0.0
  %1452 = vmatprep.subr.mxu0 0.0
  %1453 = vmatpush1.msra.mxu0 0.0
  %1454 = vmatprep.subr.mxu0 0.0
  %1455 = vmatpush1.msra.mxu0 0.0
  %1456 = vmatprep.subr.mxu0 0.0
  %1457 = vmatpush1.msra.mxu0 0.0
  %1458 = vmatprep.subr.mxu0 0.0
  %1459 = vmatpush1.msra.mxu0 0.0
  %1460 = vmatprep.subr.mxu0 0.0
  %1461 = vmatpush1.msra.mxu0 0.0
  %1462 = vmatprep.subr.mxu0 0.0
  %1463 = vmatpush1.msra.mxu0 0.0
  %1464 = vmatprep.subr.mxu0 0.0
  %1465 = vmatpush1.msra.mxu0 0.0
  %1466 = vmatprep.subr.mxu0 0.0
  %1467 = vmatpush1.msra.mxu0 0.0
  %1468 = vmatprep.subr.mxu0 0.0
  %1469 = vmatpush1.msra.mxu0 0.0
  %1470 = vmatprep.subr.mxu0 0.0
  %1471 = vmatpush1.msra.mxu0 0.0
  %1472 = vmatprep.subr.mxu0 0.0
  %1473 = vmatpush1.msra.mxu0 0.0
  %1474 = vmatprep.mubr.f32.mxu0 0.0
  %v1475 = vand.u32 %v1294, 4294901760
  %1476 = vmatmul.mubr.f32.gmra.mrb[0].mxu0 %v1475
  %v1477 = vpop.f32.mrb[0].mxu0
  %v1478 = vadd.f32 %v1375, %v1477
  %v1479 = vpop.f32.mrb[0].mxu0
  %v1480 = vadd.f32 %v1377, %v1479
  %1481 = vmatprep.mubr.f32.mxu0 0.0
  %v1482 = vand.u32 %v1297, 4294901760
  %1483 = vmatmul.mubr.f32.gmra.mrb[0].mxu0 %v1482
  %v1484 = vpop.f32.mrb[0].mxu0
  %v1485 = vadd.f32 %v1386, %v1484
  %v1486 = vpop.f32.mrb[0].mxu0
  %v1487 = vadd.f32 %v1388, %v1486
  %1488 = vdwg.mxu0
  %v1489 = vand.u32 %v1278, 4294901760
  %v1490 = vsub.f32 %v1278, %v1489
  %1491 = vmatprep.subr.mxu0 %v1490
  %v1492 = vand.u32 %v1277, 4294901760
  %v1493 = vsub.f32 %v1277, %v1492
  %1494 = vmatpush1.msra.mxu0 %v1493
  %v1495 = vand.u32 %v1282, 4294901760
  %v1496 = vsub.f32 %v1282, %v1495
  %1497 = vmatprep.subr.mxu0 %v1496
  %v1498 = vand.u32 %v1281, 4294901760
  %v1499 = vsub.f32 %v1281, %v1498
  %1500 = vmatpush1.msra.mxu0 %v1499
  %1501 = vmatprep.subr.mxu0 0.0
  %1502 = vmatpush1.msra.mxu0 0.0
  %1503 = vmatprep.subr.mxu0 0.0
  %1504 = vmatpush1.msra.mxu0 0.0
  %1505 = vmatprep.subr.mxu0 0.0
  %1506 = vmatpush1.msra.mxu0 0.0
  %1507 = vmatprep.subr.mxu0 0.0
  %1508 = vmatpush1.msra.mxu0 0.0
  %1509 = vmatprep.subr.mxu0 0.0
  %1510 = vmatpush1.msra.mxu0 0.0
  %1511 = vmatprep.subr.mxu0 0.0
  %1512 = vmatpush1.msra.mxu0 0.0
  %1513 = vmatprep.subr.mxu0 0.0
  %1514 = vmatpush1.msra.mxu0 0.0
  %1515 = vmatprep.subr.mxu0 0.0
  %1516 = vmatpush1.msra.mxu0 0.0
  %1517 = vmatprep.subr.mxu0 0.0
  %1518 = vmatpush1.msra.mxu0 0.0
  %1519 = vmatprep.subr.mxu0 0.0
  %1520 = vmatpush1.msra.mxu0 0.0
  %1521 = vmatprep.subr.mxu0 0.0
  %1522 = vmatpush1.msra.mxu0 0.0
  %1523 = vmatprep.subr.mxu0 0.0
  %1524 = vmatpush1.msra.mxu0 0.0
  %1525 = vmatprep.subr.mxu0 0.0
  %1526 = vmatpush1.msra.mxu0 0.0
  %1527 = vmatprep.subr.mxu0 0.0
  %1528 = vmatpush1.msra.mxu0 0.0
  %1529 = vmatprep.subr.mxu0 0.0
  %1530 = vmatpush1.msra.mxu0 0.0
  %1531 = vmatprep.subr.mxu0 0.0
  %1532 = vmatpush1.msra.mxu0 0.0
  %1533 = vmatprep.subr.mxu0 0.0
  %1534 = vmatpush1.msra.mxu0 0.0
  %1535 = vmatprep.subr.mxu0 0.0
  %1536 = vmatpush1.msra.mxu0 0.0
  %1537 = vmatprep.subr.mxu0 0.0
  %1538 = vmatpush1.msra.mxu0 0.0
  %1539 = vmatprep.subr.mxu0 0.0
  %1540 = vmatpush1.msra.mxu0 0.0
  %1541 = vmatprep.subr.mxu0 0.0
  %1542 = vmatpush1.msra.mxu0 0.0
  %1543 = vmatprep.subr.mxu0 0.0
  %1544 = vmatpush1.msra.mxu0 0.0
  %1545 = vmatprep.subr.mxu0 0.0
  %1546 = vmatpush1.msra.mxu0 0.0
  %1547 = vmatprep.subr.mxu0 0.0
  %1548 = vmatpush1.msra.mxu0 0.0
  %1549 = vmatprep.subr.mxu0 0.0
  %1550 = vmatpush1.msra.mxu0 0.0
  %1551 = vmatprep.subr.mxu0 0.0
  %1552 = vmatpush1.msra.mxu0 0.0
  %1553 = vmatprep.subr.mxu0 0.0
  %1554 = vmatpush1.msra.mxu0 0.0
  %1555 = vmatprep.subr.mxu0 0.0
  %1556 = vmatpush1.msra.mxu0 0.0
  %1557 = vmatprep.subr.mxu0 0.0
  %1558 = vmatpush1.msra.mxu0 0.0
  %1559 = vmatprep.subr.mxu0 0.0
  %1560 = vmatpush1.msra.mxu0 0.0
  %1561 = vmatprep.mubr.f32.mxu0 0.0
  %v1562 = vand.u32 %v1294, 4294901760
  %v1563 = vsub.f32 %v1294, %v1562
  %1564 = vmatmul.mubr.f32.gmra.mrb[0].mxu0 %v1563
  %v1565 = vpop.f32.mrb[0].mxu0
  %v1566 = vadd.f32 %v1478, %v1565
  %v1567 = vpop.f32.mrb[0].mxu0
  %v1568 = vadd.f32 %v1480, %v1567
  %1569 = vmatprep.mubr.f32.mxu0 0.0
  %v1570 = vand.u32 %v1297, 4294901760
  %v1571 = vsub.f32 %v1297, %v1570
  %1572 = vmatmul.mubr.f32.gmra.mrb[0].mxu0 %v1571
  %v1573 = vpop.f32.mrb[0].mxu0
  %v1574 = vadd.f32 %v1485, %v1573
  %v1575 = vpop.f32.mrb[0].mxu0
  %v1576 = vadd.f32 %v1487, %v1575
  %1577 = vdwg.mxu0
  %v1578 = vand.u32 %v1278, 4294901760
  %1579 = vmatprep.subr.mxu0 %v1578
  %v1580 = vand.u32 %v1277, 4294901760
  %1581 = vmatpush1.msra.mxu0 %v1580
  %v1582 = vand.u32 %v1282, 4294901760
  %1583 = vmatprep.subr.mxu0 %v1582
  %v1584 = vand.u32 %v1281, 4294901760
  %1585 = vmatpush1.msra.mxu0 %v1584
  %1586 = vmatprep.subr.mxu0 0.0
  %1587 = vmatpush1.msra.mxu0 0.0
  %1588 = vmatprep.subr.mxu0 0.0
  %1589 = vmatpush1.msra.mxu0 0.0
  %1590 = vmatprep.subr.mxu0 0.0
  %1591 = vmatpush1.msra.mxu0 0.0
  %1592 = vmatprep.subr.mxu0 0.0
  %1593 = vmatpush1.msra.mxu0 0.0
  %1594 = vmatprep.subr.mxu0 0.0
  %1595 = vmatpush1.msra.mxu0 0.0
  %1596 = vmatprep.subr.mxu0 0.0
  %1597 = vmatpush1.msra.mxu0 0.0
  %1598 = vmatprep.subr.mxu0 0.0
  %1599 = vmatpush1.msra.mxu0 0.0
  %1600 = vmatprep.subr.mxu0 0.0
  %1601 = vmatpush1.msra.mxu0 0.0
  %1602 = vmatprep.subr.mxu0 0.0
  %1603 = vmatpush1.msra.mxu0 0.0
  %1604 = vmatprep.subr.mxu0 0.0
  %1605 = vmatpush1.msra.mxu0 0.0
  %1606 = vmatprep.subr.mxu0 0.0
  %1607 = vmatpush1.msra.mxu0 0.0
  %1608 = vmatprep.subr.mxu0 0.0
  %1609 = vmatpush1.msra.mxu0 0.0
  %1610 = vmatprep.subr.mxu0 0.0
  %1611 = vmatpush1.msra.mxu0 0.0
  %1612 = vmatprep.subr.mxu0 0.0
  %1613 = vmatpush1.msra.mxu0 0.0
  %1614 = vmatprep.subr.mxu0 0.0
  %1615 = vmatpush1.msra.mxu0 0.0
  %1616 = vmatprep.subr.mxu0 0.0
  %1617 = vmatpush1.msra.mxu0 0.0
  %1618 = vmatprep.subr.mxu0 0.0
  %1619 = vmatpush1.msra.mxu0 0.0
  %1620 = vmatprep.subr.mxu0 0.0
  %1621 = vmatpush1.msra.mxu0 0.0
  %1622 = vmatprep.subr.mxu0 0.0
  %1623 = vmatpush1.msra.mxu0 0.0
  %1624 = vmatprep.subr.mxu0 0.0
  %1625 = vmatpush1.msra.mxu0 0.0
  %1626 = vmatprep.subr.mxu0 0.0
  %1627 = vmatpush1.msra.mxu0 0.0
  %1628 = vmatprep.subr.mxu0 0.0
  %1629 = vmatpush1.msra.mxu0 0.0
  %1630 = vmatprep.subr.mxu0 0.0
  %1631 = vmatpush1.msra.mxu0 0.0
  %1632 = vmatprep.subr.mxu0 0.0
  %1633 = vmatpush1.msra.mxu0 0.0
  %1634 = vmatprep.subr.mxu0 0.0
  %1635 = vmatpush1.msra.mxu0 0.0
  %1636 = vmatprep.subr.mxu0 0.0
  %1637 = vmatpush1.msra.mxu0 0.0
  %1638 = vmatprep.subr.mxu0 0.0
  %1639 = vmatpush1.msra.mxu0 0.0
  %1640 = vmatprep.subr.mxu0 0.0
  %1641 = vmatpush1.msra.mxu0 0.0
  %1642 = vmatprep.subr.mxu0 0.0
  %1643 = vmatpush1.msra.mxu0 0.0
  %1644 = vmatprep.subr.mxu0 0.0
  %1645 = vmatpush1.msra.mxu0 0.0
  %1646 = vmatprep.mubr.f32.mxu0 0.0
  %v1647 = vand.u32 %v1294, 4294901760
  %v1648 = vsub.f32 %v1294, %v1647
  %v1649 = vand.u32 %v1648, 4294901760
  %1650 = vmatmul.mubr.f32.gmra.mrb[0].mxu0 %v1649
  %v1651 = vpop.f32.mrb[0].mxu0
  %v1652 = vadd.f32 %v1566, %v1651
  %v1653 = vpop.f32.mrb[0].mxu0
  %v1654 = vadd.f32 %v1568, %v1653
  %1655 = vmatprep.mubr.f32.mxu0 0.0
  %v1656 = vand.u32 %v1297, 4294901760
  %v1657 = vsub.f32 %v1297, %v1656
  %v1658 = vand.u32 %v1657, 4294901760
  %1659 = vmatmul.mubr.f32.gmra.mrb[0].mxu0 %v1658
  %v1660 = vpop.f32.mrb[0].mxu0
  %v1661 = vadd.f32 %v1574, %v1660
  %v1662 = vpop.f32.mrb[0].mxu0
  %v1663 = vadd.f32 %v1576, %v1662
  %1664 = vdwg.mxu0
  %v1665 = vand.u32 %v1278, 4294901760
  %v1666 = vsub.f32 %v1278, %v1665
  %v1667 = vand.u32 %v1666, 4294901760
  %1668 = vmatprep.subr.mxu0 %v1667
  %v1669 = vand.u32 %v1277, 4294901760
  %v1670 = vsub.f32 %v1277, %v1669
  %v1671 = vand.u32 %v1670, 4294901760
  %1672 = vmatpush1.msra.mxu0 %v1671
  %v1673 = vand.u32 %v1282, 4294901760
  %v1674 = vsub.f32 %v1282, %v1673
  %v1675 = vand.u32 %v1674, 4294901760
  %1676 = vmatprep.subr.mxu0 %v1675
  %v1677 = vand.u32 %v1281, 4294901760
  %v1678 = vsub.f32 %v1281, %v1677
  %v1679 = vand.u32 %v1678, 4294901760
  %1680 = vmatpush1.msra.mxu0 %v1679
  %1681 = vmatprep.subr.mxu0 0.0
  %1682 = vmatpush1.msra.mxu0 0.0
  %1683 = vmatprep.subr.mxu0 0.0
  %1684 = vmatpush1.msra.mxu0 0.0
  %1685 = vmatprep.subr.mxu0 0.0
  %1686 = vmatpush1.msra.mxu0 0.0
  %1687 = vmatprep.subr.mxu0 0.0
  %1688 = vmatpush1.msra.mxu0 0.0
  %1689 = vmatprep.subr.mxu0 0.0
  %1690 = vmatpush1.msra.mxu0 0.0
  %1691 = vmatprep.subr.mxu0 0.0
  %1692 = vmatpush1.msra.mxu0 0.0
  %1693 = vmatprep.subr.mxu0 0.0
  %1694 = vmatpush1.msra.mxu0 0.0
  %1695 = vmatprep.subr.mxu0 0.0
  %1696 = vmatpush1.msra.mxu0 0.0
  %1697 = vmatprep.subr.mxu0 0.0
  %1698 = vmatpush1.msra.mxu0 0.0
  %1699 = vmatprep.subr.mxu0 0.0
  %1700 = vmatpush1.msra.mxu0 0.0
  %1701 = vmatprep.subr.mxu0 0.0
  %1702 = vmatpush1.msra.mxu0 0.0
  %1703 = vmatprep.subr.mxu0 0.0
  %1704 = vmatpush1.msra.mxu0 0.0
  %1705 = vmatprep.subr.mxu0 0.0
  %1706 = vmatpush1.msra.mxu0 0.0
  %1707 = vmatprep.subr.mxu0 0.0
  %1708 = vmatpush1.msra.mxu0 0.0
  %1709 = vmatprep.subr.mxu0 0.0
  %1710 = vmatpush1.msra.mxu0 0.0
  %1711 = vmatprep.subr.mxu0 0.0
  %1712 = vmatpush1.msra.mxu0 0.0
  %1713 = vmatprep.subr.mxu0 0.0
  %1714 = vmatpush1.msra.mxu0 0.0
  %1715 = vmatprep.subr.mxu0 0.0
  %1716 = vmatpush1.msra.mxu0 0.0
  %1717 = vmatprep.subr.mxu0 0.0
  %1718 = vmatpush1.msra.mxu0 0.0
  %1719 = vmatprep.subr.mxu0 0.0
  %1720 = vmatpush1.msra.mxu0 0.0
  %1721 = vmatprep.subr.mxu0 0.0
  %1722 = vmatpush1.msra.mxu0 0.0
  %1723 = vmatprep.subr.mxu0 0.0
  %1724 = vmatpush1.msra.mxu0 0.0
  %1725 = vmatprep.subr.mxu0 0.0
  %1726 = vmatpush1.msra.mxu0 0.0
  %1727 = vmatprep.subr.mxu0 0.0
  %1728 = vmatpush1.msra.mxu0 0.0
  %1729 = vmatprep.subr.mxu0 0.0
  %1730 = vmatpush1.msra.mxu0 0.0
  %1731 = vmatprep.subr.mxu0 0.0
  %1732 = vmatpush1.msra.mxu0 0.0
  %1733 = vmatprep.subr.mxu0 0.0
  %1734 = vmatpush1.msra.mxu0 0.0
  %1735 = vmatprep.subr.mxu0 0.0
  %1736 = vmatpush1.msra.mxu0 0.0
  %1737 = vmatprep.subr.mxu0 0.0
  %1738 = vmatpush1.msra.mxu0 0.0
  %1739 = vmatprep.subr.mxu0 0.0
  %1740 = vmatpush1.msra.mxu0 0.0
  %1741 = vmatprep.mubr.f32.mxu0 0.0
  %v1742 = vand.u32 %v1294, 4294901760
  %1743 = vmatmul.mubr.f32.gmra.mrb[0].mxu0 %v1742
  %v1744 = vpop.f32.mrb[0].mxu0
  %v1745 = vadd.f32 %v1652, %v1744
  %v1746 = vpop.f32.mrb[0].mxu0
  %v1747 = vadd.f32 %v1654, %v1746
  %1748 = vmatprep.mubr.f32.mxu0 0.0
  %v1749 = vand.u32 %v1297, 4294901760
  %1750 = vmatmul.mubr.f32.gmra.mrb[0].mxu0 %v1749
  %v1751 = vpop.f32.mrb[0].mxu0
  %v1752 = vadd.f32 %v1661, %v1751
  %v1753 = vpop.f32.mrb[0].mxu0
  %v1754 = vadd.f32 %v1663, %v1753
  %1755 = vdwg.mxu0
  %v1756 = vand.u32 %v1278, 4294901760
  %1757 = vmatprep.subr.mxu0 %v1756
  %v1758 = vand.u32 %v1277, 4294901760
  %1759 = vmatpush1.msra.mxu0 %v1758
  %v1760 = vand.u32 %v1282, 4294901760
  %1761 = vmatprep.subr.mxu0 %v1760
  %v1762 = vand.u32 %v1281, 4294901760
  %1763 = vmatpush1.msra.mxu0 %v1762
  %1764 = vmatprep.subr.mxu0 0.0
  %1765 = vmatpush1.msra.mxu0 0.0
  %1766 = vmatprep.subr.mxu0 0.0
  %1767 = vmatpush1.msra.mxu0 0.0
  %1768 = vmatprep.subr.mxu0 0.0
  %1769 = vmatpush1.msra.mxu0 0.0
  %1770 = vmatprep.subr.mxu0 0.0
  %1771 = vmatpush1.msra.mxu0 0.0
  %1772 = vmatprep.subr.mxu0 0.0
  %1773 = vmatpush1.msra.mxu0 0.0
  %1774 = vmatprep.subr.mxu0 0.0
  %1775 = vmatpush1.msra.mxu0 0.0
  %1776 = vmatprep.subr.mxu0 0.0
  %1777 = vmatpush1.msra.mxu0 0.0
  %1778 = vmatprep.subr.mxu0 0.0
  %1779 = vmatpush1.msra.mxu0 0.0
  %1780 = vmatprep.subr.mxu0 0.0
  %1781 = vmatpush1.msra.mxu0 0.0
  %1782 = vmatprep.subr.mxu0 0.0
  %1783 = vmatpush1.msra.mxu0 0.0
  %1784 = vmatprep.subr.mxu0 0.0
  %1785 = vmatpush1.msra.mxu0 0.0
  %1786 = vmatprep.subr.mxu0 0.0
  %1787 = vmatpush1.msra.mxu0 0.0
  %1788 = vmatprep.subr.mxu0 0.0
  %1789 = vmatpush1.msra.mxu0 0.0
  %1790 = vmatprep.subr.mxu0 0.0
  %1791 = vmatpush1.msra.mxu0 0.0
  %1792 = vmatprep.subr.mxu0 0.0
  %1793 = vmatpush1.msra.mxu0 0.0
  %1794 = vmatprep.subr.mxu0 0.0
  %1795 = vmatpush1.msra.mxu0 0.0
  %1796 = vmatprep.subr.mxu0 0.0
  %1797 = vmatpush1.msra.mxu0 0.0
  %1798 = vmatprep.subr.mxu0 0.0
  %1799 = vmatpush1.msra.mxu0 0.0
  %1800 = vmatprep.subr.mxu0 0.0
  %1801 = vmatpush1.msra.mxu0 0.0
  %1802 = vmatprep.subr.mxu0 0.0
  %1803 = vmatpush1.msra.mxu0 0.0
  %1804 = vmatprep.subr.mxu0 0.0
  %1805 = vmatpush1.msra.mxu0 0.0
  %1806 = vmatprep.subr.mxu0 0.0
  %1807 = vmatpush1.msra.mxu0 0.0
  %1808 = vmatprep.subr.mxu0 0.0
  %1809 = vmatpush1.msra.mxu0 0.0
  %1810 = vmatprep.subr.mxu0 0.0
  %1811 = vmatpush1.msra.mxu0 0.0
  %1812 = vmatprep.subr.mxu0 0.0
  %1813 = vmatpush1.msra.mxu0 0.0
  %1814 = vmatprep.subr.mxu0 0.0
  %1815 = vmatpush1.msra.mxu0 0.0
  %1816 = vmatprep.subr.mxu0 0.0
  %1817 = vmatpush1.msra.mxu0 0.0
  %1818 = vmatprep.subr.mxu0 0.0
  %1819 = vmatpush1.msra.mxu0 0.0
  %1820 = vmatprep.subr.mxu0 0.0
  %1821 = vmatpush1.msra.mxu0 0.0
  %1822 = vmatprep.subr.mxu0 0.0
  %1823 = vmatpush1.msra.mxu0 0.0
  %1824 = vmatprep.mubr.f32.mxu0 0.0
  %v1825 = vand.u32 %v1294, 4294901760
  %1826 = vmatmul.mubr.f32.gmra.mrb[0].mxu0 %v1825
  %v1827 = vpop.f32.mrb[0].mxu0
  %v1828 = vadd.f32 %v1745, %v1827
  %v1829 = vpop.f32.mrb[0].mxu0
  %v1830 = vadd.f32 %v1747, %v1829
  %1831 = vmatprep.mubr.f32.mxu0 0.0
  %v1832 = vand.u32 %v1297, 4294901760
  %1833 = vmatmul.mubr.f32.gmra.mrb[0].mxu0 %v1832
  %v1834 = vpop.f32.mrb[0].mxu0
  %v1835 = vadd.f32 %v1752, %v1834
  %v1836 = vpop.f32.mrb[0].mxu0
  %v1837 = vadd.f32 %v1754, %v1836
  %1838 = vdwg.mxu0
  %v1839 = vand.u32 %v1280, 4294901760
  %1840 = vmatprep.subr.mxu0 %v1839
  %v1841 = vand.u32 %v1279, 4294901760
  %1842 = vmatpush1.msra.mxu0 %v1841
  %v1843 = vand.u32 %v1284, 4294901760
  %1844 = vmatprep.subr.mxu0 %v1843
  %v1845 = vand.u32 %v1283, 4294901760
  %1846 = vmatpush1.msra.mxu0 %v1845
  %1847 = vmatprep.subr.mxu0 0.0
  %1848 = vmatpush1.msra.mxu0 0.0
  %1849 = vmatprep.subr.mxu0 0.0
  %1850 = vmatpush1.msra.mxu0 0.0
  %1851 = vmatprep.subr.mxu0 0.0
  %1852 = vmatpush1.msra.mxu0 0.0
  %1853 = vmatprep.subr.mxu0 0.0
  %1854 = vmatpush1.msra.mxu0 0.0
  %1855 = vmatprep.subr.mxu0 0.0
  %1856 = vmatpush1.msra.mxu0 0.0
  %1857 = vmatprep.subr.mxu0 0.0
  %1858 = vmatpush1.msra.mxu0 0.0
  %1859 = vmatprep.subr.mxu0 0.0
  %1860 = vmatpush1.msra.mxu0 0.0
  %1861 = vmatprep.subr.mxu0 0.0
  %1862 = vmatpush1.msra.mxu0 0.0
  %1863 = vmatprep.subr.mxu0 0.0
  %1864 = vmatpush1.msra.mxu0 0.0
  %1865 = vmatprep.subr.mxu0 0.0
  %1866 = vmatpush1.msra.mxu0 0.0
  %1867 = vmatprep.subr.mxu0 0.0
  %1868 = vmatpush1.msra.mxu0 0.0
  %1869 = vmatprep.subr.mxu0 0.0
  %1870 = vmatpush1.msra.mxu0 0.0
  %1871 = vmatprep.subr.mxu0 0.0
  %1872 = vmatpush1.msra.mxu0 0.0
  %1873 = vmatprep.subr.mxu0 0.0
  %1874 = vmatpush1.msra.mxu0 0.0
  %1875 = vmatprep.subr.mxu0 0.0
  %1876 = vmatpush1.msra.mxu0 0.0
  %1877 = vmatprep.subr.mxu0 0.0
  %1878 = vmatpush1.msra.mxu0 0.0
  %1879 = vmatprep.subr.mxu0 0.0
  %1880 = vmatpush1.msra.mxu0 0.0
  %1881 = vmatprep.subr.mxu0 0.0
  %1882 = vmatpush1.msra.mxu0 0.0
  %1883 = vmatprep.subr.mxu0 0.0
  %1884 = vmatpush1.msra.mxu0 0.0
  %1885 = vmatprep.subr.mxu0 0.0
  %1886 = vmatpush1.msra.mxu0 0.0
  %1887 = vmatprep.subr.mxu0 0.0
  %1888 = vmatpush1.msra.mxu0 0.0
  %1889 = vmatprep.subr.mxu0 0.0
  %1890 = vmatpush1.msra.mxu0 0.0
  %1891 = vmatprep.subr.mxu0 0.0
  %1892 = vmatpush1.msra.mxu0 0.0
  %1893 = vmatprep.subr.mxu0 0.0
  %1894 = vmatpush1.msra.mxu0 0.0
  %1895 = vmatprep.subr.mxu0 0.0
  %1896 = vmatpush1.msra.mxu0 0.0
  %1897 = vmatprep.subr.mxu0 0.0
  %1898 = vmatpush1.msra.mxu0 0.0
  %1899 = vmatprep.subr.mxu0 0.0
  %1900 = vmatpush1.msra.mxu0 0.0
  %1901 = vmatprep.subr.mxu0 0.0
  %1902 = vmatpush1.msra.mxu0 0.0
  %1903 = vmatprep.subr.mxu0 0.0
  %1904 = vmatpush1.msra.mxu0 0.0
  %1905 = vmatprep.subr.mxu0 0.0
  %1906 = vmatpush1.msra.mxu0 0.0
  %1907 = vmatprep.mubr.f32.mxu0 0.0
  %v1908 = vand.u32 %v1294, 4294901760
  %v1909 = vsub.f32 %v1294, %v1908
  %v1910 = vand.u32 %v1909, 4294901760
  %v1911 = vsub.f32 %v1909, %v1910
  %v1912 = vand.u32 %v1911, 4294901760
  %1913 = vmatmul.mubr.f32.gmra.mrb[0].mxu0 %v1912
  %v1914 = vpop.f32.mrb[0].mxu0
  %v1915 = vadd.f32 %v1287, %v1914
  %v1916 = vpop.f32.mrb[0].mxu0
  %v1917 = vadd.f32 %v1288, %v1916
  %1918 = vmatprep.mubr.f32.mxu0 0.0
  %v1919 = vand.u32 %v1297, 4294901760
  %v1920 = vsub.f32 %v1297, %v1919
  %v1921 = vand.u32 %v1920, 4294901760
  %v1922 = vsub.f32 %v1920, %v1921
  %v1923 = vand.u32 %v1922, 4294901760
  %1924 = vmatmul.mubr.f32.gmra.mrb[0].mxu0 %v1923
  %v1925 = vpop.f32.mrb[0].mxu0
  %v1926 = vadd.f32 %v1291, %v1925
  %v1927 = vpop.f32.mrb[0].mxu0
  %v1928 = vadd.f32 %v1292, %v1927
  %1929 = vdwg.mxu0
  %v1930 = vand.u32 %v1280, 4294901760
  %v1931 = vsub.f32 %v1280, %v1930
  %v1932 = vand.u32 %v1931, 4294901760
  %v1933 = vsub.f32 %v1931, %v1932
  %v1934 = vand.u32 %v1933, 4294901760
  %1935 = vmatprep.subr.mxu0 %v1934
  %v1936 = vand.u32 %v1279, 4294901760
  %v1937 = vsub.f32 %v1279, %v1936
  %v1938 = vand.u32 %v1937, 4294901760
  %v1939 = vsub.f32 %v1937, %v1938
  %v1940 = vand.u32 %v1939, 4294901760
  %1941 = vmatpush1.msra.mxu0 %v1940
  %v1942 = vand.u32 %v1284, 4294901760
  %v1943 = vsub.f32 %v1284, %v1942
  %v1944 = vand.u32 %v1943, 4294901760
  %v1945 = vsub.f32 %v1943, %v1944
  %v1946 = vand.u32 %v1945, 4294901760
  %1947 = vmatprep.subr.mxu0 %v1946
  %v1948 = vand.u32 %v1283, 4294901760
  %v1949 = vsub.f32 %v1283, %v1948
  %v1950 = vand.u32 %v1949, 4294901760
  %v1951 = vsub.f32 %v1949, %v1950
  %v1952 = vand.u32 %v1951, 4294901760
  %1953 = vmatpush1.msra.mxu0 %v1952
  %1954 = vmatprep.subr.mxu0 0.0
  %1955 = vmatpush1.msra.mxu0 0.0
  %1956 = vmatprep.subr.mxu0 0.0
  %1957 = vmatpush1.msra.mxu0 0.0
  %1958 = vmatprep.subr.mxu0 0.0
  %1959 = vmatpush1.msra.mxu0 0.0
  %1960 = vmatprep.subr.mxu0 0.0
  %1961 = vmatpush1.msra.mxu0 0.0
  %1962 = vmatprep.subr.mxu0 0.0
  %1963 = vmatpush1.msra.mxu0 0.0
  %1964 = vmatprep.subr.mxu0 0.0
  %1965 = vmatpush1.msra.mxu0 0.0
  %1966 = vmatprep.subr.mxu0 0.0
  %1967 = vmatpush1.msra.mxu0 0.0
  %1968 = vmatprep.subr.mxu0 0.0
  %1969 = vmatpush1.msra.mxu0 0.0
  %1970 = vmatprep.subr.mxu0 0.0
  %1971 = vmatpush1.msra.mxu0 0.0
  %1972 = vmatprep.subr.mxu0 0.0
  %1973 = vmatpush1.msra.mxu0 0.0
  %1974 = vmatprep.subr.mxu0 0.0
  %1975 = vmatpush1.msra.mxu0 0.0
  %1976 = vmatprep.subr.mxu0 0.0
  %1977 = vmatpush1.msra.mxu0 0.0
  %1978 = vmatprep.subr.mxu0 0.0
  %1979 = vmatpush1.msra.mxu0 0.0
  %1980 = vmatprep.subr.mxu0 0.0
  %1981 = vmatpush1.msra.mxu0 0.0
  %1982 = vmatprep.subr.mxu0 0.0
  %1983 = vmatpush1.msra.mxu0 0.0
  %1984 = vmatprep.subr.mxu0 0.0
  %1985 = vmatpush1.msra.mxu0 0.0
  %1986 = vmatprep.subr.mxu0 0.0
  %1987 = vmatpush1.msra.mxu0 0.0
  %1988 = vmatprep.subr.mxu0 0.0
  %1989 = vmatpush1.msra.mxu0 0.0
  %1990 = vmatprep.subr.mxu0 0.0
  %1991 = vmatpush1.msra.mxu0 0.0
  %1992 = vmatprep.subr.mxu0 0.0
  %1993 = vmatpush1.msra.mxu0 0.0
  %1994 = vmatprep.subr.mxu0 0.0
  %1995 = vmatpush1.msra.mxu0 0.0
  %1996 = vmatprep.subr.mxu0 0.0
  %1997 = vmatpush1.msra.mxu0 0.0
  %1998 = vmatprep.subr.mxu0 0.0
  %1999 = vmatpush1.msra.mxu0 0.0
  %2000 = vmatprep.subr.mxu0 0.0
  %2001 = vmatpush1.msra.mxu0 0.0
  %2002 = vmatprep.subr.mxu0 0.0
  %2003 = vmatpush1.msra.mxu0 0.0
  %2004 = vmatprep.subr.mxu0 0.0
  %2005 = vmatpush1.msra.mxu0 0.0
  %2006 = vmatprep.subr.mxu0 0.0
  %2007 = vmatpush1.msra.mxu0 0.0
  %2008 = vmatprep.subr.mxu0 0.0
  %2009 = vmatpush1.msra.mxu0 0.0
  %2010 = vmatprep.subr.mxu0 0.0
  %2011 = vmatpush1.msra.mxu0 0.0
  %2012 = vmatprep.subr.mxu0 0.0
  %2013 = vmatpush1.msra.mxu0 0.0
  %2014 = vmatprep.mubr.f32.mxu0 0.0
  %v2015 = vand.u32 %v1294, 4294901760
  %2016 = vmatmul.mubr.f32.gmra.mrb[0].mxu0 %v2015
  %v2017 = vpop.f32.mrb[0].mxu0
  %v2018 = vadd.f32 %v1915, %v2017
  %v2019 = vpop.f32.mrb[0].mxu0
  %v2020 = vadd.f32 %v1917, %v2019
  %2021 = vmatprep.mubr.f32.mxu0 0.0
  %v2022 = vand.u32 %v1297, 4294901760
  %2023 = vmatmul.mubr.f32.gmra.mrb[0].mxu0 %v2022
  %v2024 = vpop.f32.mrb[0].mxu0
  %v2025 = vadd.f32 %v1926, %v2024
  %v2026 = vpop.f32.mrb[0].mxu0
  %v2027 = vadd.f32 %v1928, %v2026
  %2028 = vdwg.mxu0
  %v2029 = vand.u32 %v1280, 4294901760
  %v2030 = vsub.f32 %v1280, %v2029
  %2031 = vmatprep.subr.mxu0 %v2030
  %v2032 = vand.u32 %v1279, 4294901760
  %v2033 = vsub.f32 %v1279, %v2032
  %2034 = vmatpush1.msra.mxu0 %v2033
  %v2035 = vand.u32 %v1284, 4294901760
  %v2036 = vsub.f32 %v1284, %v2035
  %2037 = vmatprep.subr.mxu0 %v2036
  %v2038 = vand.u32 %v1283, 4294901760
  %v2039 = vsub.f32 %v1283, %v2038
  %2040 = vmatpush1.msra.mxu0 %v2039
  %2041 = vmatprep.subr.mxu0 0.0
  %2042 = vmatpush1.msra.mxu0 0.0
  %2043 = vmatprep.subr.mxu0 0.0
  %2044 = vmatpush1.msra.mxu0 0.0
  %2045 = vmatprep.subr.mxu0 0.0
  %2046 = vmatpush1.msra.mxu0 0.0
  %2047 = vmatprep.subr.mxu0 0.0
  %2048 = vmatpush1.msra.mxu0 0.0
  %2049 = vmatprep.subr.mxu0 0.0
  %2050 = vmatpush1.msra.mxu0 0.0
  %2051 = vmatprep.subr.mxu0 0.0
  %2052 = vmatpush1.msra.mxu0 0.0
  %2053 = vmatprep.subr.mxu0 0.0
  %2054 = vmatpush1.msra.mxu0 0.0
  %2055 = vmatprep.subr.mxu0 0.0
  %2056 = vmatpush1.msra.mxu0 0.0
  %2057 = vmatprep.subr.mxu0 0.0
  %2058 = vmatpush1.msra.mxu0 0.0
  %2059 = vmatprep.subr.mxu0 0.0
  %2060 = vmatpush1.msra.mxu0 0.0
  %2061 = vmatprep.subr.mxu0 0.0
  %2062 = vmatpush1.msra.mxu0 0.0
  %2063 = vmatprep.subr.mxu0 0.0
  %2064 = vmatpush1.msra.mxu0 0.0
  %2065 = vmatprep.subr.mxu0 0.0
  %2066 = vmatpush1.msra.mxu0 0.0
  %2067 = vmatprep.subr.mxu0 0.0
  %2068 = vmatpush1.msra.mxu0 0.0
  %2069 = vmatprep.subr.mxu0 0.0
  %2070 = vmatpush1.msra.mxu0 0.0
  %2071 = vmatprep.subr.mxu0 0.0
  %2072 = vmatpush1.msra.mxu0 0.0
  %2073 = vmatprep.subr.mxu0 0.0
  %2074 = vmatpush1.msra.mxu0 0.0
  %2075 = vmatprep.subr.mxu0 0.0
  %2076 = vmatpush1.msra.mxu0 0.0
  %2077 = vmatprep.subr.mxu0 0.0
  %2078 = vmatpush1.msra.mxu0 0.0
  %2079 = vmatprep.subr.mxu0 0.0
  %2080 = vmatpush1.msra.mxu0 0.0
  %2081 = vmatprep.subr.mxu0 0.0
  %2082 = vmatpush1.msra.mxu0 0.0
  %2083 = vmatprep.subr.mxu0 0.0
  %2084 = vmatpush1.msra.mxu0 0.0
  %2085 = vmatprep.subr.mxu0 0.0
  %2086 = vmatpush1.msra.mxu0 0.0
  %2087 = vmatprep.subr.mxu0 0.0
  %2088 = vmatpush1.msra.mxu0 0.0
  %2089 = vmatprep.subr.mxu0 0.0
  %2090 = vmatpush1.msra.mxu0 0.0
  %2091 = vmatprep.subr.mxu0 0.0
  %2092 = vmatpush1.msra.mxu0 0.0
  %2093 = vmatprep.subr.mxu0 0.0
  %2094 = vmatpush1.msra.mxu0 0.0
  %2095 = vmatprep.subr.mxu0 0.0
  %2096 = vmatpush1.msra.mxu0 0.0
  %2097 = vmatprep.subr.mxu0 0.0
  %2098 = vmatpush1.msra.mxu0 0.0
  %2099 = vmatprep.subr.mxu0 0.0
  %2100 = vmatpush1.msra.mxu0 0.0
  %2101 = vmatprep.mubr.f32.mxu0 0.0
  %v2102 = vand.u32 %v1294, 4294901760
  %v2103 = vsub.f32 %v1294, %v2102
  %2104 = vmatmul.mubr.f32.gmra.mrb[0].mxu0 %v2103
  %v2105 = vpop.f32.mrb[0].mxu0
  %v2106 = vadd.f32 %v2018, %v2105
  %v2107 = vpop.f32.mrb[0].mxu0
  %v2108 = vadd.f32 %v2020, %v2107
  %2109 = vmatprep.mubr.f32.mxu0 0.0
  %v2110 = vand.u32 %v1297, 4294901760
  %v2111 = vsub.f32 %v1297, %v2110
  %2112 = vmatmul.mubr.f32.gmra.mrb[0].mxu0 %v2111
  %v2113 = vpop.f32.mrb[0].mxu0
  %v2114 = vadd.f32 %v2025, %v2113
  %v2115 = vpop.f32.mrb[0].mxu0
  %v2116 = vadd.f32 %v2027, %v2115
  %2117 = vdwg.mxu0
  %v2118 = vand.u32 %v1280, 4294901760
  %2119 = vmatprep.subr.mxu0 %v2118
  %v2120 = vand.u32 %v1279, 4294901760
  %2121 = vmatpush1.msra.mxu0 %v2120
  %v2122 = vand.u32 %v1284, 4294901760
  %2123 = vmatprep.subr.mxu0 %v2122
  %v2124 = vand.u32 %v1283, 4294901760
  %2125 = vmatpush1.msra.mxu0 %v2124
  %2126 = vmatprep.subr.mxu0 0.0
  %2127 = vmatpush1.msra.mxu0 0.0
  %2128 = vmatprep.subr.mxu0 0.0
  %2129 = vmatpush1.msra.mxu0 0.0
  %2130 = vmatprep.subr.mxu0 0.0
  %2131 = vmatpush1.msra.mxu0 0.0
  %2132 = vmatprep.subr.mxu0 0.0
  %2133 = vmatpush1.msra.mxu0 0.0
  %2134 = vmatprep.subr.mxu0 0.0
  %2135 = vmatpush1.msra.mxu0 0.0
  %2136 = vmatprep.subr.mxu0 0.0
  %2137 = vmatpush1.msra.mxu0 0.0
  %2138 = vmatprep.subr.mxu0 0.0
  %2139 = vmatpush1.msra.mxu0 0.0
  %2140 = vmatprep.subr.mxu0 0.0
  %2141 = vmatpush1.msra.mxu0 0.0
  %2142 = vmatprep.subr.mxu0 0.0
  %2143 = vmatpush1.msra.mxu0 0.0
  %2144 = vmatprep.subr.mxu0 0.0
  %2145 = vmatpush1.msra.mxu0 0.0
  %2146 = vmatprep.subr.mxu0 0.0
  %2147 = vmatpush1.msra.mxu0 0.0
  %2148 = vmatprep.subr.mxu0 0.0
  %2149 = vmatpush1.msra.mxu0 0.0
  %2150 = vmatprep.subr.mxu0 0.0
  %2151 = vmatpush1.msra.mxu0 0.0
  %2152 = vmatprep.subr.mxu0 0.0
  %2153 = vmatpush1.msra.mxu0 0.0
  %2154 = vmatprep.subr.mxu0 0.0
  %2155 = vmatpush1.msra.mxu0 0.0
  %2156 = vmatprep.subr.mxu0 0.0
  %2157 = vmatpush1.msra.mxu0 0.0
  %2158 = vmatprep.subr.mxu0 0.0
  %2159 = vmatpush1.msra.mxu0 0.0
  %2160 = vmatprep.subr.mxu0 0.0
  %2161 = vmatpush1.msra.mxu0 0.0
  %2162 = vmatprep.subr.mxu0 0.0
  %2163 = vmatpush1.msra.mxu0 0.0
  %2164 = vmatprep.subr.mxu0 0.0
  %2165 = vmatpush1.msra.mxu0 0.0
  %2166 = vmatprep.subr.mxu0 0.0
  %2167 = vmatpush1.msra.mxu0 0.0
  %2168 = vmatprep.subr.mxu0 0.0
  %2169 = vmatpush1.msra.mxu0 0.0
  %2170 = vmatprep.subr.mxu0 0.0
  %2171 = vmatpush1.msra.mxu0 0.0
  %2172 = vmatprep.subr.mxu0 0.0
  %2173 = vmatpush1.msra.mxu0 0.0
  %2174 = vmatprep.subr.mxu0 0.0
  %2175 = vmatpush1.msra.mxu0 0.0
  %2176 = vmatprep.subr.mxu0 0.0
  %2177 = vmatpush1.msra.mxu0 0.0
  %2178 = vmatprep.subr.mxu0 0.0
  %2179 = vmatpush1.msra.mxu0 0.0
  %2180 = vmatprep.subr.mxu0 0.0
  %2181 = vmatpush1.msra.mxu0 0.0
  %2182 = vmatprep.subr.mxu0 0.0
  %2183 = vmatpush1.msra.mxu0 0.0
  %2184 = vmatprep.subr.mxu0 0.0
  %2185 = vmatpush1.msra.mxu0 0.0
  %2186 = vmatprep.mubr.f32.mxu0 0.0
  %v2187 = vand.u32 %v1294, 4294901760
  %v2188 = vsub.f32 %v1294, %v2187
  %v2189 = vand.u32 %v2188, 4294901760
  %2190 = vmatmul.mubr.f32.gmra.mrb[0].mxu0 %v2189
  %v2191 = vpop.f32.mrb[0].mxu0
  %v2192 = vadd.f32 %v2106, %v2191
  %v2193 = vpop.f32.mrb[0].mxu0
  %v2194 = vadd.f32 %v2108, %v2193
  %2195 = vmatprep.mubr.f32.mxu0 0.0
  %v2196 = vand.u32 %v1297, 4294901760
  %v2197 = vsub.f32 %v1297, %v2196
  %v2198 = vand.u32 %v2197, 4294901760
  %2199 = vmatmul.mubr.f32.gmra.mrb[0].mxu0 %v2198
  %v2200 = vpop.f32.mrb[0].mxu0
  %v2201 = vadd.f32 %v2114, %v2200
  %v2202 = vpop.f32.mrb[0].mxu0
  %v2203 = vadd.f32 %v2116, %v2202
  %2204 = vdwg.mxu0
  %v2205 = vand.u32 %v1280, 4294901760
  %v2206 = vsub.f32 %v1280, %v2205
  %v2207 = vand.u32 %v2206, 4294901760
  %2208 = vmatprep.subr.mxu0 %v2207
  %v2209 = vand.u32 %v1279, 4294901760
  %v2210 = vsub.f32 %v1279, %v2209
  %v2211 = vand.u32 %v2210, 4294901760
  %2212 = vmatpush1.msra.mxu0 %v2211
  %v2213 = vand.u32 %v1284, 4294901760
  %v2214 = vsub.f32 %v1284, %v2213
  %v2215 = vand.u32 %v2214, 4294901760
  %2216 = vmatprep.subr.mxu0 %v2215
  %v2217 = vand.u32 %v1283, 4294901760
  %v2218 = vsub.f32 %v1283, %v2217
  %v2219 = vand.u32 %v2218, 4294901760
  %2220 = vmatpush1.msra.mxu0 %v2219
  %2221 = vmatprep.subr.mxu0 0.0
  %2222 = vmatpush1.msra.mxu0 0.0
  %2223 = vmatprep.subr.mxu0 0.0
  %2224 = vmatpush1.msra.mxu0 0.0
  %2225 = vmatprep.subr.mxu0 0.0
  %2226 = vmatpush1.msra.mxu0 0.0
  %2227 = vmatprep.subr.mxu0 0.0
  %2228 = vmatpush1.msra.mxu0 0.0
  %2229 = vmatprep.subr.mxu0 0.0
  %2230 = vmatpush1.msra.mxu0 0.0
  %2231 = vmatprep.subr.mxu0 0.0
  %2232 = vmatpush1.msra.mxu0 0.0
  %2233 = vmatprep.subr.mxu0 0.0
  %2234 = vmatpush1.msra.mxu0 0.0
  %2235 = vmatprep.subr.mxu0 0.0
  %2236 = vmatpush1.msra.mxu0 0.0
  %2237 = vmatprep.subr.mxu0 0.0
  %2238 = vmatpush1.msra.mxu0 0.0
  %2239 = vmatprep.subr.mxu0 0.0
  %2240 = vmatpush1.msra.mxu0 0.0
  %2241 = vmatprep.subr.mxu0 0.0
  %2242 = vmatpush1.msra.mxu0 0.0
  %2243 = vmatprep.subr.mxu0 0.0
  %2244 = vmatpush1.msra.mxu0 0.0
  %2245 = vmatprep.subr.mxu0 0.0
  %2246 = vmatpush1.msra.mxu0 0.0
  %2247 = vmatprep.subr.mxu0 0.0
  %2248 = vmatpush1.msra.mxu0 0.0
  %2249 = vmatprep.subr.mxu0 0.0
  %2250 = vmatpush1.msra.mxu0 0.0
  %2251 = vmatprep.subr.mxu0 0.0
  %2252 = vmatpush1.msra.mxu0 0.0
  %2253 = vmatprep.subr.mxu0 0.0
  %2254 = vmatpush1.msra.mxu0 0.0
  %2255 = vmatprep.subr.mxu0 0.0
  %2256 = vmatpush1.msra.mxu0 0.0
  %2257 = vmatprep.subr.mxu0 0.0
  %2258 = vmatpush1.msra.mxu0 0.0
  %2259 = vmatprep.subr.mxu0 0.0
  %2260 = vmatpush1.msra.mxu0 0.0
  %2261 = vmatprep.subr.mxu0 0.0
  %2262 = vmatpush1.msra.mxu0 0.0
  %2263 = vmatprep.subr.mxu0 0.0
  %2264 = vmatpush1.msra.mxu0 0.0
  %2265 = vmatprep.subr.mxu0 0.0
  %2266 = vmatpush1.msra.mxu0 0.0
  %2267 = vmatprep.subr.mxu0 0.0
  %2268 = vmatpush1.msra.mxu0 0.0
  %2269 = vmatprep.subr.mxu0 0.0
  %2270 = vmatpush1.msra.mxu0 0.0
  %2271 = vmatprep.subr.mxu0 0.0
  %2272 = vmatpush1.msra.mxu0 0.0
  %2273 = vmatprep.subr.mxu0 0.0
  %2274 = vmatpush1.msra.mxu0 0.0
  %2275 = vmatprep.subr.mxu0 0.0
  %2276 = vmatpush1.msra.mxu0 0.0
  %2277 = vmatprep.subr.mxu0 0.0
  %2278 = vmatpush1.msra.mxu0 0.0
  %2279 = vmatprep.subr.mxu0 0.0
  %2280 = vmatpush1.msra.mxu0 0.0
  %2281 = vmatprep.mubr.f32.mxu0 0.0
  %v2282 = vand.u32 %v1294, 4294901760
  %2283 = vmatmul.mubr.f32.gmra.mrb[0].mxu0 %v2282
  %v2284 = vpop.f32.mrb[0].mxu0
  %v2285 = vadd.f32 %v2192, %v2284
  %v2286 = vpop.f32.mrb[0].mxu0
  %v2287 = vadd.f32 %v2194, %v2286
  %2288 = vmatprep.mubr.f32.mxu0 0.0
  %v2289 = vand.u32 %v1297, 4294901760
  %2290 = vmatmul.mubr.f32.gmra.mrb[0].mxu0 %v2289
  %v2291 = vpop.f32.mrb[0].mxu0
  %v2292 = vadd.f32 %v2201, %v2291
  %v2293 = vpop.f32.mrb[0].mxu0
  %v2294 = vadd.f32 %v2203, %v2293
  %2295 = vdwg.mxu0
  %v2296 = vand.u32 %v1280, 4294901760
  %2297 = vmatprep.subr.mxu0 %v2296
  %v2298 = vand.u32 %v1279, 4294901760
  %2299 = vmatpush1.msra.mxu0 %v2298
  %v2300 = vand.u32 %v1284, 4294901760
  %2301 = vmatprep.subr.mxu0 %v2300
  %v2302 = vand.u32 %v1283, 4294901760
  %2303 = vmatpush1.msra.mxu0 %v2302
  %2304 = vmatprep.subr.mxu0 0.0
  %2305 = vmatpush1.msra.mxu0 0.0
  %2306 = vmatprep.subr.mxu0 0.0
  %2307 = vmatpush1.msra.mxu0 0.0
  %2308 = vmatprep.subr.mxu0 0.0
  %2309 = vmatpush1.msra.mxu0 0.0
  %2310 = vmatprep.subr.mxu0 0.0
  %2311 = vmatpush1.msra.mxu0 0.0
  %2312 = vmatprep.subr.mxu0 0.0
  %2313 = vmatpush1.msra.mxu0 0.0
  %2314 = vmatprep.subr.mxu0 0.0
  %2315 = vmatpush1.msra.mxu0 0.0
  %2316 = vmatprep.subr.mxu0 0.0
  %2317 = vmatpush1.msra.mxu0 0.0
  %2318 = vmatprep.subr.mxu0 0.0
  %2319 = vmatpush1.msra.mxu0 0.0
  %2320 = vmatprep.subr.mxu0 0.0
  %2321 = vmatpush1.msra.mxu0 0.0
  %2322 = vmatprep.subr.mxu0 0.0
  %2323 = vmatpush1.msra.mxu0 0.0
  %2324 = vmatprep.subr.mxu0 0.0
  %2325 = vmatpush1.msra.mxu0 0.0
  %2326 = vmatprep.subr.mxu0 0.0
  %2327 = vmatpush1.msra.mxu0 0.0
  %2328 = vmatprep.subr.mxu0 0.0
  %2329 = vmatpush1.msra.mxu0 0.0
  %2330 = vmatprep.subr.mxu0 0.0
  %2331 = vmatpush1.msra.mxu0 0.0
  %2332 = vmatprep.subr.mxu0 0.0
  %2333 = vmatpush1.msra.mxu0 0.0
  %2334 = vmatprep.subr.mxu0 0.0
  %2335 = vmatpush1.msra.mxu0 0.0
  %2336 = vmatprep.subr.mxu0 0.0
  %2337 = vmatpush1.msra.mxu0 0.0
  %2338 = vmatprep.subr.mxu0 0.0
  %2339 = vmatpush1.msra.mxu0 0.0
  %2340 = vmatprep.subr.mxu0 0.0
  %2341 = vmatpush1.msra.mxu0 0.0
  %2342 = vmatprep.subr.mxu0 0.0
  %2343 = vmatpush1.msra.mxu0 0.0
  %2344 = vmatprep.subr.mxu0 0.0
  %2345 = vmatpush1.msra.mxu0 0.0
  %2346 = vmatprep.subr.mxu0 0.0
  %2347 = vmatpush1.msra.mxu0 0.0
  %2348 = vmatprep.subr.mxu0 0.0
  %2349 = vmatpush1.msra.mxu0 0.0
  %2350 = vmatprep.subr.mxu0 0.0
  %2351 = vmatpush1.msra.mxu0 0.0
  %2352 = vmatprep.subr.mxu0 0.0
  %2353 = vmatpush1.msra.mxu0 0.0
  %2354 = vmatprep.subr.mxu0 0.0
  %2355 = vmatpush1.msra.mxu0 0.0
  %2356 = vmatprep.subr.mxu0 0.0
  %2357 = vmatpush1.msra.mxu0 0.0
  %2358 = vmatprep.subr.mxu0 0.0
  %2359 = vmatpush1.msra.mxu0 0.0
  %2360 = vmatprep.subr.mxu0 0.0
  %2361 = vmatpush1.msra.mxu0 0.0
  %2362 = vmatprep.subr.mxu0 0.0
  %2363 = vmatpush1.msra.mxu0 0.0
  %2364 = vmatprep.mubr.f32.mxu0 0.0
  %v2365 = vand.u32 %v1294, 4294901760
  %2366 = vmatmul.mubr.f32.gmra.mrb[0].mxu0 %v2365
  %v2367 = vpop.f32.mrb[0].mxu0
  %v2368 = vadd.f32 %v2285, %v2367
  %v2369 = vpop.f32.mrb[0].mxu0
  %v2370 = vadd.f32 %v2287, %v2369
  %2371 = vmatprep.mubr.f32.mxu0 0.0
  %v2372 = vand.u32 %v1297, 4294901760
  %2373 = vmatmul.mubr.f32.gmra.mrb[0].mxu0 %v2372
  %v2374 = vpop.f32.mrb[0].mxu0
  %v2375 = vadd.f32 %v2292, %v2374
  %v2376 = vpop.f32.mrb[0].mxu0
  %v2377 = vadd.f32 %v2294, %v2376
  %2378 = vdwg.mxu0
  %v2379 = vld [vmem:[%s3] sm:$0xf]
  %v2380 = vld [vmem:[%s3 + $0x4] sm:$0xf]
  %v2381 = vld [vmem:[%s3 + $0x8] sm:$0xf]
  %v2382 = vld [vmem:[%s3 + $0xc] sm:$0xf]
  %v2387 = vlaneseq
  %v2388 = vshrl.u32 %v2387, 7
  %v2389 = vsub.s32 0, %v2388
  %v2390 = vrot.slane %v2379, %v2389
  %v2391 = vlaneseq
  %v2392 = vshrl.u32 %v2391, 7
  %v2393 = vsub.s32 1, %v2392
  %v2394 = vrot.slane %v2379, %v2393
  %v2395 = vlaneseq
  %v2396 = vshrl.u32 %v2395, 7
  %v2397 = vsub.s32 2, %v2396
  %v2398 = vrot.slane %v2379, %v2397
  %v2399 = vlaneseq
  %v2400 = vshrl.u32 %v2399, 7
  %v2401 = vsub.s32 3, %v2400
  %v2402 = vrot.slane %v2379, %v2401
  %v2403 = vlaneseq
  %v2404 = vshrl.u32 %v2403, 7
  %v2405 = vsub.s32 0, %v2404
  %v2406 = vrot.slane %v2380, %v2405
  %v2407 = vlaneseq
  %v2408 = vshrl.u32 %v2407, 7
  %v2409 = vsub.s32 1, %v2408
  %v2410 = vrot.slane %v2380, %v2409
  %v2411 = vlaneseq
  %v2412 = vshrl.u32 %v2411, 7
  %v2413 = vsub.s32 2, %v2412
  %v2414 = vrot.slane %v2380, %v2413
  %v2415 = vlaneseq
  %v2416 = vshrl.u32 %v2415, 7
  %v2417 = vsub.s32 3, %v2416
  %v2418 = vrot.slane %v2380, %v2417
  %v2419 = vlaneseq
  %v2420 = vshrl.u32 %v2419, 7
  %v2421 = vsub.s32 0, %v2420
  %v2422 = vrot.slane %v2381, %v2421
  %v2423 = vlaneseq
  %v2424 = vshrl.u32 %v2423, 7
  %v2425 = vsub.s32 1, %v2424
  %v2426 = vrot.slane %v2381, %v2425
  %v2427 = vlaneseq
  %v2428 = vshrl.u32 %v2427, 7
  %v2429 = vsub.s32 2, %v2428
  %v2430 = vrot.slane %v2381, %v2429
  %v2431 = vlaneseq
  %v2432 = vshrl.u32 %v2431, 7
  %v2433 = vsub.s32 3, %v2432
  %v2434 = vrot.slane %v2381, %v2433
  %v2435 = vlaneseq
  %v2436 = vshrl.u32 %v2435, 7
  %v2437 = vsub.s32 0, %v2436
  %v2438 = vrot.slane %v2382, %v2437
  %v2439 = vlaneseq
  %v2440 = vshrl.u32 %v2439, 7
  %v2441 = vsub.s32 1, %v2440
  %v2442 = vrot.slane %v2382, %v2441
  %v2443 = vlaneseq
  %v2444 = vshrl.u32 %v2443, 7
  %v2445 = vsub.s32 2, %v2444
  %v2446 = vrot.slane %v2382, %v2445
  %v2447 = vlaneseq
  %v2448 = vshrl.u32 %v2447, 7
  %v2449 = vsub.s32 3, %v2448
  %v2450 = vrot.slane %v2382, %v2449
  %v2467 = vmul.f32 %v1828, %v2390
  %v2468 = vmul.f32 %v1830, %v2394
  %v2469 = vmul.f32 %v2368, %v2398
  %v2470 = vmul.f32 %v2370, %v2402
  %v2471 = vmul.f32 %v1835, %v2390
  %v2472 = vmul.f32 %v1837, %v2394
  %v2473 = vmul.f32 %v2375, %v2398
  %v2474 = vmul.f32 %v2377, %v2402
  %v2475 = vmul.f32 %v1828, %v2406
  %v2476 = vmul.f32 %v1830, %v2410
  %v2477 = vmul.f32 %v2368, %v2414
  %v2478 = vmul.f32 %v2370, %v2418
  %v2479 = vmul.f32 %v1835, %v2406
  %v2480 = vmul.f32 %v1837, %v2410
  %v2481 = vmul.f32 %v2375, %v2414
  %v2482 = vmul.f32 %v2377, %v2418
  %v2483 = vmul.f32 %v1828, %v2422
  %v2484 = vmul.f32 %v1830, %v2426
  %v2485 = vmul.f32 %v2368, %v2430
  %v2486 = vmul.f32 %v2370, %v2434
  %v2487 = vmul.f32 %v1835, %v2422
  %v2488 = vmul.f32 %v1837, %v2426
  %v2489 = vmul.f32 %v2375, %v2430
  %v2490 = vmul.f32 %v2377, %v2434
  %v2491 = vmul.f32 %v1828, %v2438
  %v2492 = vmul.f32 %v1830, %v2442
  %v2493 = vmul.f32 %v2368, %v2446
  %v2494 = vmul.f32 %v2370, %v2450
  %v2495 = vmul.f32 %v1835, %v2438
  %v2496 = vmul.f32 %v1837, %v2442
  %v2497 = vmul.f32 %v2375, %v2446
  %v2498 = vmul.f32 %v2377, %v2450
  %s2499 = scalar_lea.vmem %s4, 256
  %2500 = vst [vmem:[%s2499] sm:$0xff] %v2467
  %2501 = vst [vmem:[%s2499 + $0x8] sm:$0xff] %v2468
  %2502 = vst [vmem:[%s2499 + $0x10] sm:$0xff] %v2469
  %2503 = vst [vmem:[%s2499 + $0x18] sm:$0xff] %v2470
  %2504 = vst [vmem:[%s2499 + $0x20] sm:$0xff] %v2471
  %2505 = vst [vmem:[%s2499 + $0x28] sm:$0xff] %v2472
  %2506 = vst [vmem:[%s2499 + $0x30] sm:$0xff] %v2473
  %2507 = vst [vmem:[%s2499 + $0x38] sm:$0xff] %v2474
  %2508 = vst [vmem:[%s2499 + $0x40] sm:$0xff] %v2475
  %2509 = vst [vmem:[%s2499 + $0x48] sm:$0xff] %v2476
  %2510 = vst [vmem:[%s2499 + $0x50] sm:$0xff] %v2477
  %2511 = vst [vmem:[%s2499 + $0x58] sm:$0xff] %v2478
  %2512 = vst [vmem:[%s2499 + $0x60] sm:$0xff] %v2479
  %2513 = vst [vmem:[%s2499 + $0x68] sm:$0xff] %v2480
  %2514 = vst [vmem:[%s2499 + $0x70] sm:$0xff] %v2481
  %2515 = vst [vmem:[%s2499 + $0x78] sm:$0xff] %v2482
  %2516 = vst [vmem:[%s2499 + $0x80] sm:$0xff] %v2483
  %2517 = vst [vmem:[%s2499 + $0x88] sm:$0xff] %v2484
  %2518 = vst [vmem:[%s2499 + $0x90] sm:$0xff] %v2485
  %2519 = vst [vmem:[%s2499 + $0x98] sm:$0xff] %v2486
  %2520 = vst [vmem:[%s2499 + $0xa0] sm:$0xff] %v2487
  %2521 = vst [vmem:[%s2499 + $0xa8] sm:$0xff] %v2488
  %2522 = vst [vmem:[%s2499 + $0xb0] sm:$0xff] %v2489
  %2523 = vst [vmem:[%s2499 + $0xb8] sm:$0xff] %v2490
  %2524 = vst [vmem:[%s2499 + $0xc0] sm:$0xff] %v2491
  %2525 = vst [vmem:[%s2499 + $0xc8] sm:$0xff] %v2492
  %2526 = vst [vmem:[%s2499 + $0xd0] sm:$0xff] %v2493
  %2527 = vst [vmem:[%s2499 + $0xd8] sm:$0xff] %v2494
  %2528 = vst [vmem:[%s2499 + $0xe0] sm:$0xff] %v2495
  %2529 = vst [vmem:[%s2499 + $0xe8] sm:$0xff] %v2496
  %2530 = vst [vmem:[%s2499 + $0xf0] sm:$0xff] %v2497
  %2531 = vst [vmem:[%s2499 + $0xf8] sm:$0xff] %v2498
  // Predicated region
  $region18: #{branch_trunk_forward.1} parent=0 // pred_check
    _
  $region19: #{branch_trunk_forward.1} parent=0 // pred_check_branch
    %2533 = sbr.rel (0) target = $region21
  $region20: #{branch_trunk_forward.1} parent=0 // pred_region
    _
  $region21: #{branch_trunk_forward.1} parent=0 // pred_fallthru
    _
  // Predicated region
  $region22: #{branch_trunk_forward.1} parent=0 // pred_check
    _
  $region23: #{branch_trunk_forward.1} parent=0 // pred_check_branch
    %2535 = sbr.rel (0) target = $region25
  $region24: #{branch_trunk_forward.1} parent=0 // pred_region
    _
  $region25: #{branch_trunk_forward.1} parent=0 // pred_fallthru
    _

</llo_original>
